<compile_context>
chip_gen: v6e
topology: v6e:2x2x1
jax: 0.10.0
libtpu: 0.0.40
codegen_flags: <defaults>
</compile_context>

<pallas_src>
import functools

import jax
import jax.numpy as jnp
import numpy as np
from jax import lax
from jax.experimental import pallas as pl
from jax.experimental.pallas import tpu as pltpu

EMB_DIM = 300       # hard-coded by nn.Embedding(vocab_size, 300) in the module
HEAD_LANES = 128    # lane-dense head output width
B_TILE_MAX = 128    # batch rows per grid step


def _round_up(x, m):
    return (x + m - 1) // m * m


def _prior_kernel(emb_ref,      # [B_TILE*Tp, E]  bf16  (batch-major, time-minor rows)
                  w_in_ref,     # [E, 8H]         bf16  fused input weights (gate-major, dir-minor)
                  b_in_ref,     # [1, 8H]         f32   fused biases (b_ih + b_hh)
                  w_hh_ref,     # [2H, 8H]        f32   fused recurrent weights (block-diag)
                  w_head_ref,   # [2H, HP]        f32   [w_mu | w_var | 0-pad]
                  b_head_ref,   # [1, HP]         f32
                  out_ref,      # [B_TILE, HP]    f32   [mu | log_var | 0-pad]
                  *, seq_len):
    B = out_ref.shape[0]
    Tp = emb_ref.shape[0] // B
    H2 = w_hh_ref.shape[0]       # 2H  (fwd hidden | bwd hidden)
    H = H2 // 2
    G = w_hh_ref.shape[1]        # 8H  (i, f, g, o) x (fwd, bwd)

    # ---- hoisted input projection: one bf16 MXU matmul, f32 accumulation, biases in.
    gates_in = (jnp.dot(emb_ref[...], w_in_ref[...],
                        preferred_element_type=jnp.float32)
                + b_in_ref[...])                          # [B*Tp, 8H] f32
    # Layout-free split: f32 and Tp is a multiple of 8 (padded in the wrapper).
    gates_in = gates_in.reshape(B, Tp, G)

    w_hh = w_hh_ref[...]

    # Within each 2H gate block, the first H lanes belong to the forward direction.
    lane = lax.broadcasted_iota(jnp.int32, (B, G), 1)
    fwd_lane = (lane % H2) < H

    # Hoist the per-step direction/time selection out of the serial recurrence:
    # forward lanes consume time t, backward lanes consume time seq_len-1-t.
    xs = [jnp.where(fwd_lane, gates_in[:, t, :], gates_in[:, seq_len - 1 - t, :])
          for t in range(seq_len)]

    h = jnp.zeros((B, H2), jnp.float32)   # [h_fwd | h_bwd]
    c = jnp.zeros((B, H2), jnp.float32)   # [c_fwd | c_bwd]

    # seq_len is small & static -> fully unrolled serial recurrence.
    for t in range(seq_len):
        gates = xs[t] + jnp.dot(h, w_hh, preferred_element_type=jnp.float32)  # [B, 8H]
        sig_if = jax.nn.sigmoid(gates[:, :2 * H2])          # i | f   (one vreg pass)
        g_g = jnp.tanh(gates[:, 2 * H2:3 * H2])             # g only
        o_g = jax.nn.sigmoid(gates[:, 3 * H2:])             # o only
        i_g = sig_if[:, :H2]
        f_g = sig_if[:, H2:]
        c = f_g * c + i_g * g_g
        h = o_g * jnp.tanh(c)

    # h == concat([h_fwd_final, h_bwd_final], -1) == fixed_enc; fused heads, lane-dense out.
    out_ref[...] = (jnp.dot(h, w_head_ref[...], preferred_element_type=jnp.float32)
                    + b_head_ref[...])


def init_prior_network_params(key, vocab_size, hidden_dim, latent_dim,
                              emb_dim=EMB_DIM):
    """Deterministic synthetic parameters matching the PyTorch module's shapes."""
    ks = jax.random.split(key, 16)
    H = hidden_dim
    s_lstm = 1.0 / np.sqrt(H)
    s_lin = 1.0 / np.sqrt(2 * H)

    def unif(k, shape, s):
        return jax.random.uniform(k, shape, jnp.float32, -s, s)

    params = {
        "embedding": jax.random.normal(ks[0], (vocab_size, emb_dim), jnp.float32),
        # forward direction (pre-transposed for right-multiplication; gate order i,f,g,o)
        "w_ih_f": unif(ks[1], (emb_dim, 4 * H), s_lstm),
        "w_hh_f": unif(ks[2], (H, 4 * H), s_lstm),
        "b_f": unif(ks[3], (1, 4 * H), s_lstm) + unif(ks[4], (1, 4 * H), s_lstm),
        # backward direction
        "w_ih_b": unif(ks[5], (emb_dim, 4 * H), s_lstm),
        "w_hh_b": unif(ks[6], (H, 4 * H), s_lstm),
        "b_b": unif(ks[7], (1, 4 * H), s_lstm) + unif(ks[8], (1, 4 * H), s_lstm),
        # heads
        "w_mu": unif(ks[9], (2 * H, latent_dim), s_lin),
        "b_mu": unif(ks[10], (1, latent_dim), s_lin),
        "w_var": unif(ks[11], (2 * H, latent_dim), s_lin),
        "b_var": unif(ks[12], (1, latent_dim), s_lin),
    }
    return params


def prepare_prior_params(params):
    """One-time (outside jit) repack into the fused, TPU-friendly kernel layout."""
    H = params["w_hh_f"].shape[0]
    E = params["w_ih_f"].shape[0]
    L = params["w_mu"].shape[1]

    def interleave(wf, wb, rows):
        # columns -> [i_f i_b | f_f f_b | g_f g_b | o_f o_b], each sub-block H wide
        return jnp.stack([wf.reshape(rows, 4, H), wb.reshape(rows, 4, H)],
                         axis=2).reshape(rows, 8 * H)

    w_in = interleave(params["w_ih_f"], params["w_ih_b"], E)                  # [E, 8H]
    b_in = jnp.stack([params["b_f"].reshape(4, H), params["b_b"].reshape(4, H)],
                     axis=1).reshape(1, 8 * H)                                # [1, 8H]

    zeros_hh = jnp.zeros((H, 4 * H), jnp.float32)
    w_hh = jnp.concatenate(
        [interleave(params["w_hh_f"], zeros_hh, H),     # rows driven by h_fwd
         interleave(zeros_hh, params["w_hh_b"], H)],    # rows driven by h_bwd
        axis=0)                                         # [2H, 8H]

    hp = max(HEAD_LANES, _round_up(2 * L, HEAD_LANES))
    w_head = jnp.zeros((2 * H, hp), jnp.float32)
    w_head = w_head.at[:, :L].set(params["w_mu"]).at[:, L:2 * L].set(params["w_var"])
    b_head = jnp.zeros((1, hp), jnp.float32)
    b_head = b_head.at[:, :L].set(params["b_mu"]).at[:, L:2 * L].set(params["b_var"])

    return {
        "embedding": params["embedding"].astype(jnp.bfloat16),  # bf16 halves gather + DMA
        "w_in": w_in.astype(jnp.bfloat16),                      # bf16 MXU input weights
        "b_in": b_in.astype(jnp.float32),
        "w_hh": w_hh.astype(jnp.float32),                       # serial path stays f32
        "w_head": w_head,
        "b_head": b_head,
    }


@functools.partial(jax.jit, static_argnames=("latent_dim",))
def prior_network_forward(sents, lengths, fused, *, latent_dim):
    """Pallas-backed PriorNetwork.forward((sents, lengths)) -> (mu, log_var)."""
    del lengths  # reference forward never packs the sequence; runs on the full padding
    B, T = sents.shape
    E = fused["embedding"].shape[1]
    G = fused["w_in"].shape[1]
    H2 = fused["w_hh"].shape[0]
    HP = fused["w_head"].shape[1]

    b_tile = min(_round_up(B, 8), B_TILE_MAX)   # sublane-dense batch tile
    Bp = _round_up(B, b_tile)
    Tp = _round_up(T, 8)                        # makes the in-kernel f32 split layout-free

    sents_p = jnp.pad(sents, ((0, Bp - B), (0, Tp - T)))           # pad with token 0
    # Flat [Bp*Tp, E] bf16 emb slab (row-major view; no relayout inside the kernel).
    emb2d = jnp.take(fused["embedding"], sents_p.reshape(Bp * Tp), axis=0)

    rows = b_tile * Tp
    kernel = functools.partial(_prior_kernel, seq_len=T)

    out = pl.pallas_call(
        kernel,
        out_shape=jax.ShapeDtypeStruct((Bp, HP), jnp.float32),
        grid_spec=pltpu.PrefetchScalarGridSpec(
            num_scalar_prefetch=0,
            grid=(Bp // b_tile,),
            in_specs=[
                pl.BlockSpec((rows, E), lambda i: (i, 0)),     # emb block per batch tile
                pl.BlockSpec((E, G), lambda i: (0, 0)),        # weights stay resident
                pl.BlockSpec((1, G), lambda i: (0, 0)),
                pl.BlockSpec((H2, G), lambda i: (0, 0)),
                pl.BlockSpec((H2, HP), lambda i: (0, 0)),
                pl.BlockSpec((1, HP), lambda i: (0, 0)),
            ],
            out_specs=pl.BlockSpec((b_tile, HP), lambda i: (i, 0)),
        ),
        compiler_params=pltpu.CompilerParams(
            dimension_semantics=("parallel",),         # shards batch tiles across TCs
            vmem_limit_bytes=32 * 1024 * 1024,         # headroom over v5e's 16 MiB default
        ),
    )(emb2d, fused["w_in"], fused["b_in"], fused["w_hh"],
      fused["w_head"], fused["b_head"])

    mu = out[:B, :latent_dim]
    log_var = out[:B, latent_dim:2 * latent_dim]
    return mu, log_var


def _reference_forward(sents, params):
    """Pure-f32 JAX reference (mirrors PyTorch semantics) for a correctness check."""
    emb = jnp.take(params["embedding"], sents, axis=0)       # [B, T, E]
    B, T, _ = emb.shape
    H = params["w_hh_f"].shape[0]

    def cell(x_t, h, c, wih, whh, b):
        gates = x_t @ wih + h @ whh + b
        i_g = jax.nn.sigmoid(gates[:, 0:H])
        f_g = jax.nn.sigmoid(gates[:, H:2 * H])
        g_g = jnp.tanh(gates[:, 2 * H:3 * H])
        o_g = jax.nn.sigmoid(gates[:, 3 * H:4 * H])
        c = f_g * c + i_g * g_g
        h = o_g * jnp.tanh(c)
        return h, c

    h_f = c_f = h_b = c_b = jnp.zeros((B, H), jnp.float32)
    for t in range(T):
        h_f, c_f = cell(emb[:, t, :], h_f, c_f,
                        params["w_ih_f"], params["w_hh_f"], params["b_f"])
        h_b, c_b = cell(emb[:, T - 1 - t, :], h_b, c_b,
                        params["w_ih_b"], params["w_hh_b"], params["b_b"])
    fixed = jnp.concatenate([h_f, h_b], axis=-1)
    mu = fixed @ params["w_mu"] + params["b_mu"]
    log_var = fixed @ params["w_var"] + params["b_var"]
    return mu, log_var


if __name__ == "__main__":
    # Small shapes consistent with the module.
    VOCAB = 50
    HIDDEN = 32
    LATENT = 16
    B, T = 2, 8

    key = jax.random.PRNGKey(0)
    k_params, k_sents = jax.random.split(key)

    params = init_prior_network_params(k_params, VOCAB, HIDDEN, LATENT)
    fused = prepare_prior_params(params)     # one-time repack, outside the jitted forward

    sents = jax.random.randint(k_sents, (B, T), 0, VOCAB, dtype=jnp.int32)
    lengths = jnp.full((B,), T, dtype=jnp.int32)   # unused by the (unpacked) forward

    mu, log_var = prior_network_forward(sents, lengths, fused, latent_dim=LATENT)
    mu, log_var = jax.block_until_ready(mu), jax.block_until_ready(log_var)

    assert mu.shape == (B, LATENT) and log_var.shape == (B, LATENT)

    mu_ref, lv_ref = _reference_forward(sents, params)
    # bf16 embedding table + bf16 input-projection weights (f32 accumulation) vs the
    # pure-f32 reference -> modestly widened tolerance; a layout bug would be O(1) off.
    np.testing.assert_allclose(np.asarray(mu), np.asarray(mu_ref), rtol=2e-2, atol=2e-2)
    np.testing.assert_allclose(np.asarray(log_var), np.asarray(lv_ref), rtol=2e-2, atol=2e-2)

    print("KERNEL_OK")
</pallas_src>

<mosaic_0001>
module attributes {stable_mosaic.version = 11 : i64} {
  func.func @_prior_kernel(%arg0: i32, %arg1: memref<64x300xbf16, #tpu.memory_space<vmem>>, %arg2: memref<300x256xbf16, #tpu.memory_space<vmem>>, %arg3: memref<1x256xf32, #tpu.memory_space<vmem>>, %arg4: memref<64x256xf32, #tpu.memory_space<vmem>>, %arg5: memref<64x128xf32, #tpu.memory_space<vmem>>, %arg6: memref<1x128xf32, #tpu.memory_space<vmem>>, %arg7: memref<8x128xf32, #tpu.memory_space<vmem>>) attributes {dimension_semantics = [#tpu.dimension_semantics<parallel>], iteration_bounds = array<i64: 1>, scalar_prefetch = 0 : i64, scratch_operands = 0 : i64, tpu.core_type = #tpu.core_type<tc>, window_params = [{transform_indices = @transform_0, window_bounds = array<i64: 64, 300>}, {pipeline_mode = #tpu.pipeline_mode<synchronous>, transform_indices = @transform_1, window_bounds = array<i64: 300, 256>}, {pipeline_mode = #tpu.pipeline_mode<synchronous>, transform_indices = @transform_2, window_bounds = array<i64: 1, 256>}, {pipeline_mode = #tpu.pipeline_mode<synchronous>, transform_indices = @transform_3, window_bounds = array<i64: 64, 256>}, {pipeline_mode = #tpu.pipeline_mode<synchronous>, transform_indices = @transform_4, window_bounds = array<i64: 64, 128>}, {pipeline_mode = #tpu.pipeline_mode<synchronous>, transform_indices = @transform_5, window_bounds = array<i64: 1, 128>}, {transform_indices = @transform_6, window_bounds = array<i64: 8, 128>}]} {
    %c0 = arith.constant 0 : index
    %c0_0 = arith.constant 0 : index
    %0 = vector.load %arg1[%c0, %c0_0] : memref<64x300xbf16, #tpu.memory_space<vmem>>, vector<64x300xbf16>
    %c0_1 = arith.constant 0 : index
    %c0_2 = arith.constant 0 : index
    %1 = vector.load %arg2[%c0_1, %c0_2] : memref<300x256xbf16, #tpu.memory_space<vmem>>, vector<300x256xbf16>
    %cst = arith.constant dense<0.000000e+00> : vector<64x256xf32>
    %2 = tpu.matmul %0, %1, %cst {dimension_numbers = #tpu.dot_dimension_numbers<[1], [0], [0], [1], [0, 0, 1, 1], [], []>} : vector<64x300xbf16>, vector<300x256xbf16>, vector<64x256xf32> -> vector<64x256xf32>
    %c0_3 = arith.constant 0 : index
    %c0_4 = arith.constant 0 : index
    %3 = vector.load %arg3[%c0_3, %c0_4] : memref<1x256xf32, #tpu.memory_space<vmem>>, vector<1x256xf32>
    %4 = vector.broadcast %3 : vector<1x256xf32> to vector<64x256xf32>
    %5 = arith.addf %2, %4 : vector<64x256xf32>
    %6 = vector.shape_cast %5 : vector<64x256xf32> to vector<8x8x256xf32>
    %c0_5 = arith.constant 0 : index
    %c0_6 = arith.constant 0 : index
    %7 = vector.load %arg4[%c0_5, %c0_6] : memref<64x256xf32, #tpu.memory_space<vmem>>, vector<64x256xf32>
    %8 = tpu.iota {dimensions = array<i32: 1>} : vector<8x256xi32>
    %c64_i32 = arith.constant 64 : i32
    %c0_i32 = arith.constant 0 : i32
    %9 = arith.cmpi eq, %c64_i32, %c0_i32 : i32
    %c1_i32 = arith.constant 1 : i32
    %10 = arith.select %9, %c1_i32, %c64_i32 : i32
    %11 = vector.broadcast %10 : i32 to vector<8x256xi32>
    %12 = arith.remsi %8, %11 : vector<8x256xi32>
    %c0_i32_7 = arith.constant 0 : i32
    %13 = vector.broadcast %c0_i32_7 : i32 to vector<8x256xi32>
    %14 = arith.cmpi ne, %12, %13 : vector<8x256xi32>
    %c0_i32_8 = arith.constant 0 : i32
    %15 = vector.broadcast %c0_i32_8 : i32 to vector<8x256xi32>
    %16 = arith.cmpi slt, %12, %15 : vector<8x256xi32>
    %c0_i32_9 = arith.constant 0 : i32
    %17 = arith.cmpi slt, %10, %c0_i32_9 : i32
    %18 = vector.broadcast %17 : i1 to vector<8x256xi1>
    %19 = vector.broadcast %18 : vector<8x256xi1> to vector<8x256xi1>
    %20 = arith.xori %16, %19 : vector<8x256xi1>
    %21 = arith.andi %20, %14 : vector<8x256xi1>
    %22 = vector.broadcast %10 : i32 to vector<8x256xi32>
    %23 = arith.addi %12, %22 : vector<8x256xi32>
    %24 = arith.select %21, %23, %12 : vector<8x256xi1>, vector<8x256xi32>
    %c32_i32 = arith.constant 32 : i32
    %25 = vector.broadcast %c32_i32 : i32 to vector<8x256xi32>
    %26 = arith.cmpi slt, %24, %25 : vector<8x256xi32>
    %27 = vector.extract_strided_slice %6 {offsets = [0, 0, 0], sizes = [8, 1, 256], strides = [1, 1, 1]} : vector<8x8x256xf32> to vector<8x1x256xf32>
    %28 = vector.shape_cast %27 : vector<8x1x256xf32> to vector<8x256xf32>
    %29 = vector.extract_strided_slice %6 {offsets = [0, 7, 0], sizes = [8, 1, 256], strides = [1, 1, 1]} : vector<8x8x256xf32> to vector<8x1x256xf32>
    %30 = vector.shape_cast %29 : vector<8x1x256xf32> to vector<8x256xf32>
    %31 = arith.select %26, %28, %30 : vector<8x256xi1>, vector<8x256xf32>
    %32 = vector.extract_strided_slice %6 {offsets = [0, 1, 0], sizes = [8, 1, 256], strides = [1, 1, 1]} : vector<8x8x256xf32> to vector<8x1x256xf32>
    %33 = vector.shape_cast %32 : vector<8x1x256xf32> to vector<8x256xf32>
    %34 = vector.extract_strided_slice %6 {offsets = [0, 6, 0], sizes = [8, 1, 256], strides = [1, 1, 1]} : vector<8x8x256xf32> to vector<8x1x256xf32>
    %35 = vector.shape_cast %34 : vector<8x1x256xf32> to vector<8x256xf32>
    %36 = arith.select %26, %33, %35 : vector<8x256xi1>, vector<8x256xf32>
    %37 = vector.extract_strided_slice %6 {offsets = [0, 2, 0], sizes = [8, 1, 256], strides = [1, 1, 1]} : vector<8x8x256xf32> to vector<8x1x256xf32>
    %38 = vector.shape_cast %37 : vector<8x1x256xf32> to vector<8x256xf32>
    %39 = vector.extract_strided_slice %6 {offsets = [0, 5, 0], sizes = [8, 1, 256], strides = [1, 1, 1]} : vector<8x8x256xf32> to vector<8x1x256xf32>
    %40 = vector.shape_cast %39 : vector<8x1x256xf32> to vector<8x256xf32>
    %41 = arith.select %26, %38, %40 : vector<8x256xi1>, vector<8x256xf32>
    %42 = vector.extract_strided_slice %6 {offsets = [0, 3, 0], sizes = [8, 1, 256], strides = [1, 1, 1]} : vector<8x8x256xf32> to vector<8x1x256xf32>
    %43 = vector.shape_cast %42 : vector<8x1x256xf32> to vector<8x256xf32>
    %44 = vector.extract_strided_slice %6 {offsets = [0, 4, 0], sizes = [8, 1, 256], strides = [1, 1, 1]} : vector<8x8x256xf32> to vector<8x1x256xf32>
    %45 = vector.shape_cast %44 : vector<8x1x256xf32> to vector<8x256xf32>
    %46 = arith.select %26, %43, %45 : vector<8x256xi1>, vector<8x256xf32>
    %47 = vector.extract_strided_slice %6 {offsets = [0, 4, 0], sizes = [8, 1, 256], strides = [1, 1, 1]} : vector<8x8x256xf32> to vector<8x1x256xf32>
    %48 = vector.shape_cast %47 : vector<8x1x256xf32> to vector<8x256xf32>
    %49 = vector.extract_strided_slice %6 {offsets = [0, 3, 0], sizes = [8, 1, 256], strides = [1, 1, 1]} : vector<8x8x256xf32> to vector<8x1x256xf32>
    %50 = vector.shape_cast %49 : vector<8x1x256xf32> to vector<8x256xf32>
    %51 = arith.select %26, %48, %50 : vector<8x256xi1>, vector<8x256xf32>
    %52 = vector.extract_strided_slice %6 {offsets = [0, 5, 0], sizes = [8, 1, 256], strides = [1, 1, 1]} : vector<8x8x256xf32> to vector<8x1x256xf32>
    %53 = vector.shape_cast %52 : vector<8x1x256xf32> to vector<8x256xf32>
    %54 = vector.extract_strided_slice %6 {offsets = [0, 2, 0], sizes = [8, 1, 256], strides = [1, 1, 1]} : vector<8x8x256xf32> to vector<8x1x256xf32>
    %55 = vector.shape_cast %54 : vector<8x1x256xf32> to vector<8x256xf32>
    %56 = arith.select %26, %53, %55 : vector<8x256xi1>, vector<8x256xf32>
    %57 = vector.extract_strided_slice %6 {offsets = [0, 6, 0], sizes = [8, 1, 256], strides = [1, 1, 1]} : vector<8x8x256xf32> to vector<8x1x256xf32>
    %58 = vector.shape_cast %57 : vector<8x1x256xf32> to vector<8x256xf32>
    %59 = vector.extract_strided_slice %6 {offsets = [0, 1, 0], sizes = [8, 1, 256], strides = [1, 1, 1]} : vector<8x8x256xf32> to vector<8x1x256xf32>
    %60 = vector.shape_cast %59 : vector<8x1x256xf32> to vector<8x256xf32>
    %61 = arith.select %26, %58, %60 : vector<8x256xi1>, vector<8x256xf32>
    %62 = vector.extract_strided_slice %6 {offsets = [0, 7, 0], sizes = [8, 1, 256], strides = [1, 1, 1]} : vector<8x8x256xf32> to vector<8x1x256xf32>
    %63 = vector.shape_cast %62 : vector<8x1x256xf32> to vector<8x256xf32>
    %64 = vector.extract_strided_slice %6 {offsets = [0, 0, 0], sizes = [8, 1, 256], strides = [1, 1, 1]} : vector<8x8x256xf32> to vector<8x1x256xf32>
    %65 = vector.shape_cast %64 : vector<8x1x256xf32> to vector<8x256xf32>
    %66 = arith.select %26, %63, %65 : vector<8x256xi1>, vector<8x256xf32>
    %cst_10 = arith.constant 0.000000e+00 : f32
    %67 = vector.broadcast %cst_10 : f32 to vector<8x64xf32>
    %cst_11 = arith.constant 0.000000e+00 : f32
    %68 = vector.broadcast %cst_11 : f32 to vector<8x64xf32>
    %cst_12 = arith.constant dense<0.000000e+00> : vector<8x256xf32>
    %69 = tpu.matmul %67, %7, %cst_12 {dimension_numbers = #tpu.dot_dimension_numbers<[1], [0], [0], [1], [0, 0, 1, 1], [], []>} : vector<8x64xf32>, vector<64x256xf32>, vector<8x256xf32> -> vector<8x256xf32>
    %70 = arith.addf %31, %69 : vector<8x256xf32>
    %71 = vector.extract_strided_slice %70 {offsets = [0, 0], sizes = [8, 128], strides = [1, 1]} : vector<8x256xf32> to vector<8x128xf32>
    %72 = arith.negf %71 : vector<8x128xf32>
    %73 = math.exp %72 : vector<8x128xf32>
    %cst_13 = arith.constant 1.000000e+00 : f32
    %74 = vector.broadcast %cst_13 : f32 to vector<8x128xf32>
    %75 = arith.addf %74, %73 : vector<8x128xf32>
    %76 = arith.divf %74, %75 : vector<8x128xf32>
    %77 = vector.extract_strided_slice %70 {offsets = [0, 128], sizes = [8, 64], strides = [1, 1]} : vector<8x256xf32> to vector<8x64xf32>
    %78 = math.tanh %77 : vector<8x64xf32>
    %79 = vector.extract_strided_slice %70 {offsets = [0, 192], sizes = [8, 64], strides = [1, 1]} : vector<8x256xf32> to vector<8x64xf32>
    %80 = arith.negf %79 : vector<8x64xf32>
    %81 = math.exp %80 : vector<8x64xf32>
    %cst_14 = arith.constant 1.000000e+00 : f32
    %82 = vector.broadcast %cst_14 : f32 to vector<8x64xf32>
    %83 = arith.addf %82, %81 : vector<8x64xf32>
    %84 = arith.divf %82, %83 : vector<8x64xf32>
    %85 = vector.extract_strided_slice %76 {offsets = [0, 0], sizes = [8, 64], strides = [1, 1]} : vector<8x128xf32> to vector<8x64xf32>
    %86 = vector.extract_strided_slice %76 {offsets = [0, 64], sizes = [8, 64], strides = [1, 1]} : vector<8x128xf32> to vector<8x64xf32>
    %87 = arith.mulf %86, %68 : vector<8x64xf32>
    %88 = arith.mulf %85, %78 : vector<8x64xf32>
    %89 = arith.addf %87, %88 : vector<8x64xf32>
    %90 = math.tanh %89 : vector<8x64xf32>
    %91 = arith.mulf %84, %90 : vector<8x64xf32>
    %cst_15 = arith.constant dense<0.000000e+00> : vector<8x256xf32>
    %92 = tpu.matmul %91, %7, %cst_15 {dimension_numbers = #tpu.dot_dimension_numbers<[1], [0], [0], [1], [0, 0, 1, 1], [], []>} : vector<8x64xf32>, vector<64x256xf32>, vector<8x256xf32> -> vector<8x256xf32>
    %93 = arith.addf %36, %92 : vector<8x256xf32>
    %94 = vector.extract_strided_slice %93 {offsets = [0, 0], sizes = [8, 128], strides = [1, 1]} : vector<8x256xf32> to vector<8x128xf32>
    %95 = arith.negf %94 : vector<8x128xf32>
    %96 = math.exp %95 : vector<8x128xf32>
    %cst_16 = arith.constant 1.000000e+00 : f32
    %97 = vector.broadcast %cst_16 : f32 to vector<8x128xf32>
    %98 = arith.addf %97, %96 : vector<8x128xf32>
    %99 = arith.divf %97, %98 : vector<8x128xf32>
    %100 = vector.extract_strided_slice %93 {offsets = [0, 128], sizes = [8, 64], strides = [1, 1]} : vector<8x256xf32> to vector<8x64xf32>
    %101 = math.tanh %100 : vector<8x64xf32>
    %102 = vector.extract_strided_slice %93 {offsets = [0, 192], sizes = [8, 64], strides = [1, 1]} : vector<8x256xf32> to vector<8x64xf32>
    %103 = arith.negf %102 : vector<8x64xf32>
    %104 = math.exp %103 : vector<8x64xf32>
    %cst_17 = arith.constant 1.000000e+00 : f32
    %105 = vector.broadcast %cst_17 : f32 to vector<8x64xf32>
    %106 = arith.addf %105, %104 : vector<8x64xf32>
    %107 = arith.divf %105, %106 : vector<8x64xf32>
    %108 = vector.extract_strided_slice %99 {offsets = [0, 0], sizes = [8, 64], strides = [1, 1]} : vector<8x128xf32> to vector<8x64xf32>
    %109 = vector.extract_strided_slice %99 {offsets = [0, 64], sizes = [8, 64], strides = [1, 1]} : vector<8x128xf32> to vector<8x64xf32>
    %110 = arith.mulf %109, %89 : vector<8x64xf32>
    %111 = arith.mulf %108, %101 : vector<8x64xf32>
    %112 = arith.addf %110, %111 : vector<8x64xf32>
    %113 = math.tanh %112 : vector<8x64xf32>
    %114 = arith.mulf %107, %113 : vector<8x64xf32>
    %cst_18 = arith.constant dense<0.000000e+00> : vector<8x256xf32>
    %115 = tpu.matmul %114, %7, %cst_18 {dimension_numbers = #tpu.dot_dimension_numbers<[1], [0], [0], [1], [0, 0, 1, 1], [], []>} : vector<8x64xf32>, vector<64x256xf32>, vector<8x256xf32> -> vector<8x256xf32>
    %116 = arith.addf %41, %115 : vector<8x256xf32>
    %117 = vector.extract_strided_slice %116 {offsets = [0, 0], sizes = [8, 128], strides = [1, 1]} : vector<8x256xf32> to vector<8x128xf32>
    %118 = arith.negf %117 : vector<8x128xf32>
    %119 = math.exp %118 : vector<8x128xf32>
    %cst_19 = arith.constant 1.000000e+00 : f32
    %120 = vector.broadcast %cst_19 : f32 to vector<8x128xf32>
    %121 = arith.addf %120, %119 : vector<8x128xf32>
    %122 = arith.divf %120, %121 : vector<8x128xf32>
    %123 = vector.extract_strided_slice %116 {offsets = [0, 128], sizes = [8, 64], strides = [1, 1]} : vector<8x256xf32> to vector<8x64xf32>
    %124 = math.tanh %123 : vector<8x64xf32>
    %125 = vector.extract_strided_slice %116 {offsets = [0, 192], sizes = [8, 64], strides = [1, 1]} : vector<8x256xf32> to vector<8x64xf32>
    %126 = arith.negf %125 : vector<8x64xf32>
    %127 = math.exp %126 : vector<8x64xf32>
    %cst_20 = arith.constant 1.000000e+00 : f32
    %128 = vector.broadcast %cst_20 : f32 to vector<8x64xf32>
    %129 = arith.addf %128, %127 : vector<8x64xf32>
    %130 = arith.divf %128, %129 : vector<8x64xf32>
    %131 = vector.extract_strided_slice %122 {offsets = [0, 0], sizes = [8, 64], strides = [1, 1]} : vector<8x128xf32> to vector<8x64xf32>
    %132 = vector.extract_strided_slice %122 {offsets = [0, 64], sizes = [8, 64], strides = [1, 1]} : vector<8x128xf32> to vector<8x64xf32>
    %133 = arith.mulf %132, %112 : vector<8x64xf32>
    %134 = arith.mulf %131, %124 : vector<8x64xf32>
    %135 = arith.addf %133, %134 : vector<8x64xf32>
    %136 = math.tanh %135 : vector<8x64xf32>
    %137 = arith.mulf %130, %136 : vector<8x64xf32>
    %cst_21 = arith.constant dense<0.000000e+00> : vector<8x256xf32>
    %138 = tpu.matmul %137, %7, %cst_21 {dimension_numbers = #tpu.dot_dimension_numbers<[1], [0], [0], [1], [0, 0, 1, 1], [], []>} : vector<8x64xf32>, vector<64x256xf32>, vector<8x256xf32> -> vector<8x256xf32>
    %139 = arith.addf %46, %138 : vector<8x256xf32>
    %140 = vector.extract_strided_slice %139 {offsets = [0, 0], sizes = [8, 128], strides = [1, 1]} : vector<8x256xf32> to vector<8x128xf32>
    %141 = arith.negf %140 : vector<8x128xf32>
    %142 = math.exp %141 : vector<8x128xf32>
    %cst_22 = arith.constant 1.000000e+00 : f32
    %143 = vector.broadcast %cst_22 : f32 to vector<8x128xf32>
    %144 = arith.addf %143, %142 : vector<8x128xf32>
    %145 = arith.divf %143, %144 : vector<8x128xf32>
    %146 = vector.extract_strided_slice %139 {offsets = [0, 128], sizes = [8, 64], strides = [1, 1]} : vector<8x256xf32> to vector<8x64xf32>
    %147 = math.tanh %146 : vector<8x64xf32>
    %148 = vector.extract_strided_slice %139 {offsets = [0, 192], sizes = [8, 64], strides = [1, 1]} : vector<8x256xf32> to vector<8x64xf32>
    %149 = arith.negf %148 : vector<8x64xf32>
    %150 = math.exp %149 : vector<8x64xf32>
    %cst_23 = arith.constant 1.000000e+00 : f32
    %151 = vector.broadcast %cst_23 : f32 to vector<8x64xf32>
    %152 = arith.addf %151, %150 : vector<8x64xf32>
    %153 = arith.divf %151, %152 : vector<8x64xf32>
    %154 = vector.extract_strided_slice %145 {offsets = [0, 0], sizes = [8, 64], strides = [1, 1]} : vector<8x128xf32> to vector<8x64xf32>
    %155 = vector.extract_strided_slice %145 {offsets = [0, 64], sizes = [8, 64], strides = [1, 1]} : vector<8x128xf32> to vector<8x64xf32>
    %156 = arith.mulf %155, %135 : vector<8x64xf32>
    %157 = arith.mulf %154, %147 : vector<8x64xf32>
    %158 = arith.addf %156, %157 : vector<8x64xf32>
    %159 = math.tanh %158 : vector<8x64xf32>
    %160 = arith.mulf %153, %159 : vector<8x64xf32>
    %cst_24 = arith.constant dense<0.000000e+00> : vector<8x256xf32>
    %161 = tpu.matmul %160, %7, %cst_24 {dimension_numbers = #tpu.dot_dimension_numbers<[1], [0], [0], [1], [0, 0, 1, 1], [], []>} : vector<8x64xf32>, vector<64x256xf32>, vector<8x256xf32> -> vector<8x256xf32>
    %162 = arith.addf %51, %161 : vector<8x256xf32>
    %163 = vector.extract_strided_slice %162 {offsets = [0, 0], sizes = [8, 128], strides = [1, 1]} : vector<8x256xf32> to vector<8x128xf32>
    %164 = arith.negf %163 : vector<8x128xf32>
    %165 = math.exp %164 : vector<8x128xf32>
    %cst_25 = arith.constant 1.000000e+00 : f32
    %166 = vector.broadcast %cst_25 : f32 to vector<8x128xf32>
    %167 = arith.addf %166, %165 : vector<8x128xf32>
    %168 = arith.divf %166, %167 : vector<8x128xf32>
    %169 = vector.extract_strided_slice %162 {offsets = [0, 128], sizes = [8, 64], strides = [1, 1]} : vector<8x256xf32> to vector<8x64xf32>
    %170 = math.tanh %169 : vector<8x64xf32>
    %171 = vector.extract_strided_slice %162 {offsets = [0, 192], sizes = [8, 64], strides = [1, 1]} : vector<8x256xf32> to vector<8x64xf32>
    %172 = arith.negf %171 : vector<8x64xf32>
    %173 = math.exp %172 : vector<8x64xf32>
    %cst_26 = arith.constant 1.000000e+00 : f32
    %174 = vector.broadcast %cst_26 : f32 to vector<8x64xf32>
    %175 = arith.addf %174, %173 : vector<8x64xf32>
    %176 = arith.divf %174, %175 : vector<8x64xf32>
    %177 = vector.extract_strided_slice %168 {offsets = [0, 0], sizes = [8, 64], strides = [1, 1]} : vector<8x128xf32> to vector<8x64xf32>
    %178 = vector.extract_strided_slice %168 {offsets = [0, 64], sizes = [8, 64], strides = [1, 1]} : vector<8x128xf32> to vector<8x64xf32>
    %179 = arith.mulf %178, %158 : vector<8x64xf32>
    %180 = arith.mulf %177, %170 : vector<8x64xf32>
    %181 = arith.addf %179, %180 : vector<8x64xf32>
    %182 = math.tanh %181 : vector<8x64xf32>
    %183 = arith.mulf %176, %182 : vector<8x64xf32>
    %cst_27 = arith.constant dense<0.000000e+00> : vector<8x256xf32>
    %184 = tpu.matmul %183, %7, %cst_27 {dimension_numbers = #tpu.dot_dimension_numbers<[1], [0], [0], [1], [0, 0, 1, 1], [], []>} : vector<8x64xf32>, vector<64x256xf32>, vector<8x256xf32> -> vector<8x256xf32>
    %185 = arith.addf %56, %184 : vector<8x256xf32>
    %186 = vector.extract_strided_slice %185 {offsets = [0, 0], sizes = [8, 128], strides = [1, 1]} : vector<8x256xf32> to vector<8x128xf32>
    %187 = arith.negf %186 : vector<8x128xf32>
    %188 = math.exp %187 : vector<8x128xf32>
    %cst_28 = arith.constant 1.000000e+00 : f32
    %189 = vector.broadcast %cst_28 : f32 to vector<8x128xf32>
    %190 = arith.addf %189, %188 : vector<8x128xf32>
    %191 = arith.divf %189, %190 : vector<8x128xf32>
    %192 = vector.extract_strided_slice %185 {offsets = [0, 128], sizes = [8, 64], strides = [1, 1]} : vector<8x256xf32> to vector<8x64xf32>
    %193 = math.tanh %192 : vector<8x64xf32>
    %194 = vector.extract_strided_slice %185 {offsets = [0, 192], sizes = [8, 64], strides = [1, 1]} : vector<8x256xf32> to vector<8x64xf32>
    %195 = arith.negf %194 : vector<8x64xf32>
    %196 = math.exp %195 : vector<8x64xf32>
    %cst_29 = arith.constant 1.000000e+00 : f32
    %197 = vector.broadcast %cst_29 : f32 to vector<8x64xf32>
    %198 = arith.addf %197, %196 : vector<8x64xf32>
    %199 = arith.divf %197, %198 : vector<8x64xf32>
    %200 = vector.extract_strided_slice %191 {offsets = [0, 0], sizes = [8, 64], strides = [1, 1]} : vector<8x128xf32> to vector<8x64xf32>
    %201 = vector.extract_strided_slice %191 {offsets = [0, 64], sizes = [8, 64], strides = [1, 1]} : vector<8x128xf32> to vector<8x64xf32>
    %202 = arith.mulf %201, %181 : vector<8x64xf32>
    %203 = arith.mulf %200, %193 : vector<8x64xf32>
    %204 = arith.addf %202, %203 : vector<8x64xf32>
    %205 = math.tanh %204 : vector<8x64xf32>
    %206 = arith.mulf %199, %205 : vector<8x64xf32>
    %cst_30 = arith.constant dense<0.000000e+00> : vector<8x256xf32>
    %207 = tpu.matmul %206, %7, %cst_30 {dimension_numbers = #tpu.dot_dimension_numbers<[1], [0], [0], [1], [0, 0, 1, 1], [], []>} : vector<8x64xf32>, vector<64x256xf32>, vector<8x256xf32> -> vector<8x256xf32>
    %208 = arith.addf %61, %207 : vector<8x256xf32>
    %209 = vector.extract_strided_slice %208 {offsets = [0, 0], sizes = [8, 128], strides = [1, 1]} : vector<8x256xf32> to vector<8x128xf32>
    %210 = arith.negf %209 : vector<8x128xf32>
    %211 = math.exp %210 : vector<8x128xf32>
    %cst_31 = arith.constant 1.000000e+00 : f32
    %212 = vector.broadcast %cst_31 : f32 to vector<8x128xf32>
    %213 = arith.addf %212, %211 : vector<8x128xf32>
    %214 = arith.divf %212, %213 : vector<8x128xf32>
    %215 = vector.extract_strided_slice %208 {offsets = [0, 128], sizes = [8, 64], strides = [1, 1]} : vector<8x256xf32> to vector<8x64xf32>
    %216 = math.tanh %215 : vector<8x64xf32>
    %217 = vector.extract_strided_slice %208 {offsets = [0, 192], sizes = [8, 64], strides = [1, 1]} : vector<8x256xf32> to vector<8x64xf32>
    %218 = arith.negf %217 : vector<8x64xf32>
    %219 = math.exp %218 : vector<8x64xf32>
    %cst_32 = arith.constant 1.000000e+00 : f32
    %220 = vector.broadcast %cst_32 : f32 to vector<8x64xf32>
    %221 = arith.addf %220, %219 : vector<8x64xf32>
    %222 = arith.divf %220, %221 : vector<8x64xf32>
    %223 = vector.extract_strided_slice %214 {offsets = [0, 0], sizes = [8, 64], strides = [1, 1]} : vector<8x128xf32> to vector<8x64xf32>
    %224 = vector.extract_strided_slice %214 {offsets = [0, 64], sizes = [8, 64], strides = [1, 1]} : vector<8x128xf32> to vector<8x64xf32>
    %225 = arith.mulf %224, %204 : vector<8x64xf32>
    %226 = arith.mulf %223, %216 : vector<8x64xf32>
    %227 = arith.addf %225, %226 : vector<8x64xf32>
    %228 = math.tanh %227 : vector<8x64xf32>
    %229 = arith.mulf %222, %228 : vector<8x64xf32>
    %cst_33 = arith.constant dense<0.000000e+00> : vector<8x256xf32>
    %230 = tpu.matmul %229, %7, %cst_33 {dimension_numbers = #tpu.dot_dimension_numbers<[1], [0], [0], [1], [0, 0, 1, 1], [], []>} : vector<8x64xf32>, vector<64x256xf32>, vector<8x256xf32> -> vector<8x256xf32>
    %231 = arith.addf %66, %230 : vector<8x256xf32>
    %232 = vector.extract_strided_slice %231 {offsets = [0, 0], sizes = [8, 128], strides = [1, 1]} : vector<8x256xf32> to vector<8x128xf32>
    %233 = arith.negf %232 : vector<8x128xf32>
    %234 = math.exp %233 : vector<8x128xf32>
    %cst_34 = arith.constant 1.000000e+00 : f32
    %235 = vector.broadcast %cst_34 : f32 to vector<8x128xf32>
    %236 = arith.addf %235, %234 : vector<8x128xf32>
    %237 = arith.divf %235, %236 : vector<8x128xf32>
    %238 = vector.extract_strided_slice %231 {offsets = [0, 128], sizes = [8, 64], strides = [1, 1]} : vector<8x256xf32> to vector<8x64xf32>
    %239 = math.tanh %238 : vector<8x64xf32>
    %240 = vector.extract_strided_slice %231 {offsets = [0, 192], sizes = [8, 64], strides = [1, 1]} : vector<8x256xf32> to vector<8x64xf32>
    %241 = arith.negf %240 : vector<8x64xf32>
    %242 = math.exp %241 : vector<8x64xf32>
    %cst_35 = arith.constant 1.000000e+00 : f32
    %243 = vector.broadcast %cst_35 : f32 to vector<8x64xf32>
    %244 = arith.addf %243, %242 : vector<8x64xf32>
    %245 = arith.divf %243, %244 : vector<8x64xf32>
    %246 = vector.extract_strided_slice %237 {offsets = [0, 0], sizes = [8, 64], strides = [1, 1]} : vector<8x128xf32> to vector<8x64xf32>
    %247 = vector.extract_strided_slice %237 {offsets = [0, 64], sizes = [8, 64], strides = [1, 1]} : vector<8x128xf32> to vector<8x64xf32>
    %248 = arith.mulf %247, %227 : vector<8x64xf32>
    %249 = arith.mulf %246, %239 : vector<8x64xf32>
    %250 = arith.addf %248, %249 : vector<8x64xf32>
    %251 = math.tanh %250 : vector<8x64xf32>
    %252 = arith.mulf %245, %251 : vector<8x64xf32>
    %c0_36 = arith.constant 0 : index
    %c0_37 = arith.constant 0 : index
    %253 = vector.load %arg5[%c0_36, %c0_37] : memref<64x128xf32, #tpu.memory_space<vmem>>, vector<64x128xf32>
    %cst_38 = arith.constant dense<0.000000e+00> : vector<8x128xf32>
    %254 = tpu.matmul %252, %253, %cst_38 {dimension_numbers = #tpu.dot_dimension_numbers<[1], [0], [0], [1], [0, 0, 1, 1], [], []>} : vector<8x64xf32>, vector<64x128xf32>, vector<8x128xf32> -> vector<8x128xf32>
    %c0_39 = arith.constant 0 : index
    %c0_40 = arith.constant 0 : index
    %255 = vector.load %arg6[%c0_39, %c0_40] : memref<1x128xf32, #tpu.memory_space<vmem>>, vector<1x128xf32>
    %256 = vector.broadcast %255 : vector<1x128xf32> to vector<8x128xf32>
    %257 = arith.addf %254, %256 : vector<8x128xf32>
    %c0_41 = arith.constant 0 : index
    %c0_42 = arith.constant 0 : index
    %258 = vector.load %arg7[%c0_41, %c0_42] : memref<8x128xf32, #tpu.memory_space<vmem>>, vector<8x128xf32>
    tpu.vector_store %arg7[%c0_41, %c0_42], %257 {strides = array<i32>} : memref<8x128xf32, #tpu.memory_space<vmem>>, vector<8x128xf32>,
    return
  }
  func.func @transform_0(%arg0: i32) -> (i32, i32) {
    %c0_i32 = arith.constant 0 : i32
    %c0_i32_0 = arith.constant 0 : i32
    return %arg0, %c0_i32 : i32, i32
  }
  func.func @transform_1(%arg0: i32) -> (i32, i32) {
    %c0_i32 = arith.constant 0 : i32
    %c0_i32_0 = arith.constant 0 : i32
    %c0_i32_1 = arith.constant 0 : i32
    return %c0_i32, %c0_i32_0 : i32, i32
  }
  func.func @transform_2(%arg0: i32) -> (i32, i32) {
    %c0_i32 = arith.constant 0 : i32
    %c0_i32_0 = arith.constant 0 : i32
    %c0_i32_1 = arith.constant 0 : i32
    return %c0_i32, %c0_i32_0 : i32, i32
  }
  func.func @transform_3(%arg0: i32) -> (i32, i32) {
    %c0_i32 = arith.constant 0 : i32
    %c0_i32_0 = arith.constant 0 : i32
    %c0_i32_1 = arith.constant 0 : i32
    return %c0_i32, %c0_i32_0 : i32, i32
  }
  func.func @transform_4(%arg0: i32) -> (i32, i32) {
    %c0_i32 = arith.constant 0 : i32
    %c0_i32_0 = arith.constant 0 : i32
    %c0_i32_1 = arith.constant 0 : i32
    return %c0_i32, %c0_i32_0 : i32, i32
  }
  func.func @transform_5(%arg0: i32) -> (i32, i32) {
    %c0_i32 = arith.constant 0 : i32
    %c0_i32_0 = arith.constant 0 : i32
    %c0_i32_1 = arith.constant 0 : i32
    return %c0_i32, %c0_i32_0 : i32, i32
  }
  func.func @transform_6(%arg0: i32) -> (i32, i32) {
    %c0_i32 = arith.constant 0 : i32
    %c0_i32_0 = arith.constant 0 : i32
    return %arg0, %c0_i32 : i32, i32
  }
}

</mosaic_0001>

<llo_original>
// kernel: prior_network_forward.1
$region0: #{prior_network_forward.1}
  #allocation0 [shape = 'u32[]', space=smem, size = 0x4, offset = 0x4, fixed_abs, tag = 'smem constant byte address 0x4 - core index']
  #allocation1 [shape = 'u32[144,128]{1,0:T(1,128)}', space=vmem, size = 0x12000, scoped, tag = 'internal scratch']
  %s0 = inlined_call_operand.vmem [shape: bf16[64,300], index: 0, kind: input, shape index: {}]
  %s1 = inlined_call_operand.vmem [shape: bf16[300,256], index: 1, kind: input, shape index: {}]
  %s2 = inlined_call_operand.vmem [shape: f32[1,256], index: 2, kind: input, shape index: {}]
  %s3 = inlined_call_operand.vmem [shape: f32[64,256], index: 3, kind: input, shape index: {}]
  %s4 = inlined_call_operand.vmem [shape: f32[64,128], index: 4, kind: input, shape index: {}]
  %s5 = inlined_call_operand.vmem [shape: f32[1,128], index: 5, kind: input, shape index: {}]
  %s6 = inlined_call_operand.vmem [shape: f32[8,128], index: 6, kind: output, shape index: {}]
  %s7 = sld [smem:[#allocation0]]
  $region34: #{prior_network_forward.1} parent=0
    _
  %s9 = ssub.s32 1, %s7
  %s10 = scalar_select 0, %s9, %s7
  // Predicated region
  $region2: #{prior_network_forward.1} parent=0 // pred_check
    _
  $region3: #{prior_network_forward.1} parent=0 // pred_check_branch
    %12 = sbr.rel (0) target = $region5
  $region4: #{prior_network_forward.1} parent=0 // pred_region
    _
  $region5: #{prior_network_forward.1} parent=0 // pred_fallthru
    _
  // Predicated region
  $region6: #{prior_network_forward.1} parent=0 // pred_check
    _
  $region7: #{prior_network_forward.1} parent=0 // pred_check_branch
    %14 = sbr.rel (0) target = $region9
  $region8: #{prior_network_forward.1} parent=0 // pred_region
    _
  $region9: #{prior_network_forward.1} parent=0 // pred_fallthru
    _
  // Predicated region
  $region10: #{prior_network_forward.1} parent=0 // pred_check
    _
  $region11: #{prior_network_forward.1} parent=0 // pred_check_branch
    %16 = sbr.rel (0) target = $region13
  $region12: #{prior_network_forward.1} parent=0 // pred_region
    _
  $region13: #{prior_network_forward.1} parent=0 // pred_fallthru
    _
  // Predicated region
  $region14: #{prior_network_forward.1} parent=0 // pred_check
    _
  $region15: #{prior_network_forward.1} parent=0 // pred_check_branch
    %18 = sbr.rel (0) target = $region17
  $region16: #{prior_network_forward.1} parent=0 // pred_region
    _
  $region17: #{prior_network_forward.1} parent=0 // pred_fallthru
    _
  // Predicated region
  $region18: #{prior_network_forward.1} parent=0 // pred_check
    _
  $region19: #{prior_network_forward.1} parent=0 // pred_check_branch
    %20 = sbr.rel (0) target = $region21
  $region20: #{prior_network_forward.1} parent=0 // pred_region
    _
  $region21: #{prior_network_forward.1} parent=0 // pred_fallthru
    _
  // Predicated region
  $region22: #{prior_network_forward.1} parent=0 // pred_check
    _
  $region23: #{prior_network_forward.1} parent=0 // pred_check_branch
    %22 = sbr.rel (0) target = $region25
  $region24: #{prior_network_forward.1} parent=0 // pred_region
    _
  $region25: #{prior_network_forward.1} parent=0 // pred_fallthru
    _
  %v24 = vld [vmem:[%s0] sm:$0xff]
  %v25 = vld [vmem:[%s0 + $0x8] sm:$0xf]
  %v26 = vld [vmem:[%s0 + $0xc] sm:$0xff]
  %v27 = vld [vmem:[%s0 + $0x14] sm:$0xf]
  %v28 = vld [vmem:[%s0 + $0x18] sm:$0xff]
  %v29 = vld [vmem:[%s0 + $0x20] sm:$0xf]
  %v30 = vld [vmem:[%s0 + $0x24] sm:$0xff]
  %v31 = vld [vmem:[%s0 + $0x2c] sm:$0xf]
  %v32 = vld [vmem:[%s0 + $0x30] sm:$0xff]
  %v33 = vld [vmem:[%s0 + $0x38] sm:$0xf]
  %v34 = vld [vmem:[%s0 + $0x3c] sm:$0xff]
  %v35 = vld [vmem:[%s0 + $0x44] sm:$0xf]
  %v36 = vld [vmem:[%s0 + $0x48] sm:$0xff]
  %v37 = vld [vmem:[%s0 + $0x50] sm:$0xf]
  %v38 = vld [vmem:[%s0 + $0x54] sm:$0xff]
  %v39 = vld [vmem:[%s0 + $0x5c] sm:$0xf]
  %v40 = vld [vmem:[%s1] sm:$0xff]
  %v41 = vld [vmem:[%s1 + $0x8] sm:$0xff]
  %v42 = vld [vmem:[%s1 + $0x10] sm:$0xff]
  %v43 = vld [vmem:[%s1 + $0x18] sm:$0xff]
  %v44 = vld [vmem:[%s1 + $0x20] sm:$0xff]
  %v45 = vld [vmem:[%s1 + $0x28] sm:$0xff]
  %v46 = vld [vmem:[%s1 + $0x30] sm:$0xff]
  %v47 = vld [vmem:[%s1 + $0x38] sm:$0xff]
  %v48 = vld [vmem:[%s1 + $0x40] sm:$0xff]
  %v49 = vld [vmem:[%s1 + $0x48] sm:$0xff]
  %v50 = vld [vmem:[%s1 + $0x50] sm:$0xff]
  %v51 = vld [vmem:[%s1 + $0x58] sm:$0xff]
  %v52 = vld [vmem:[%s1 + $0x60] sm:$0xff]
  %v53 = vld [vmem:[%s1 + $0x68] sm:$0xff]
  %v54 = vld [vmem:[%s1 + $0x70] sm:$0xff]
  %v55 = vld [vmem:[%s1 + $0x78] sm:$0xff]
  %v56 = vld [vmem:[%s1 + $0x80] sm:$0xff]
  %v57 = vld [vmem:[%s1 + $0x88] sm:$0xff]
  %v58 = vld [vmem:[%s1 + $0x90] sm:$0xff]
  %v59 = vld [vmem:[%s1 + $0x98] sm:$0xff]
  %v60 = vld [vmem:[%s1 + $0xa0] sm:$0xff]
  %v61 = vld [vmem:[%s1 + $0xa8] sm:$0xff]
  %v62 = vld [vmem:[%s1 + $0xb0] sm:$0xff]
  %v63 = vld [vmem:[%s1 + $0xb8] sm:$0xff]
  %v64 = vld [vmem:[%s1 + $0xc0] sm:$0xff]
  %v65 = vld [vmem:[%s1 + $0xc8] sm:$0xff]
  %v66 = vld [vmem:[%s1 + $0xd0] sm:$0xff]
  %v67 = vld [vmem:[%s1 + $0xd8] sm:$0xff]
  %v68 = vld [vmem:[%s1 + $0xe0] sm:$0xff]
  %v69 = vld [vmem:[%s1 + $0xe8] sm:$0xff]
  %v70 = vld [vmem:[%s1 + $0xf0] sm:$0xff]
  %v71 = vld [vmem:[%s1 + $0xf8] sm:$0xff]
  %v72 = vld [vmem:[%s1 + $0x100] sm:$0xff]
  %v73 = vld [vmem:[%s1 + $0x108] sm:$0xff]
  %v74 = vld [vmem:[%s1 + $0x110] sm:$0xff]
  %v75 = vld [vmem:[%s1 + $0x118] sm:$0xff]
  %v76 = vld [vmem:[%s1 + $0x120] sm:$0xff]
  %v77 = vld [vmem:[%s1 + $0x128] sm:$0x33]
  %v78 = vld [vmem:[%s2] sm:$0x3]
  %v80 = vlaneseq
  %v81 = vshrl.u32 %v80, 7
  %v82 = vsub.s32 0, %v81
  %v83 = vrot.slane %v78, %v82
  %v84 = vlaneseq
  %v85 = vshrl.u32 %v84, 7
  %v86 = vsub.s32 1, %v85
  %v87 = vrot.slane %v78, %v86
  %v106 = vunpack.c.l.b16 %v24
  %v107 = vunpack.c.h.b16 %v24
  %v108 = vunpack.c.l.b16 %v25
  %v109 = vunpack.c.l.b16 %v26
  %v110 = vunpack.c.h.b16 %v26
  %v111 = vunpack.c.l.b16 %v27
  %v112 = vunpack.c.l.b16 %v28
  %v113 = vunpack.c.h.b16 %v28
  %v114 = vunpack.c.l.b16 %v29
  %v115 = vunpack.c.l.b16 %v30
  %v116 = vunpack.c.h.b16 %v30
  %v117 = vunpack.c.l.b16 %v31
  %v118 = vunpack.c.l.b16 %v32
  %v119 = vunpack.c.h.b16 %v32
  %v120 = vunpack.c.l.b16 %v33
  %v121 = vunpack.c.l.b16 %v34
  %v122 = vunpack.c.h.b16 %v34
  %v123 = vunpack.c.l.b16 %v35
  %v124 = vunpack.c.l.b16 %v36
  %v125 = vunpack.c.h.b16 %v36
  %v126 = vunpack.c.l.b16 %v37
  %v127 = vunpack.c.l.b16 %v38
  %v128 = vunpack.c.h.b16 %v38
  %v129 = vunpack.c.l.b16 %v39
  %v130 = vpack.c.b16 %v109, %v106
  %v131 = vpack.c.b16 %v110, %v107
  %v132 = vpack.c.b16 %v111, %v108
  %v133 = vpack.c.b16 %v115, %v112
  %v134 = vpack.c.b16 %v116, %v113
  %v135 = vpack.c.b16 %v117, %v114
  %v136 = vpack.c.b16 %v121, %v118
  %v137 = vpack.c.b16 %v122, %v119
  %v138 = vpack.c.b16 %v123, %v120
  %v139 = vpack.c.b16 %v127, %v124
  %v140 = vpack.c.b16 %v128, %v125
  %v141 = vpack.c.b16 %v129, %v126
  %v188 = vunpack.c.l.b16 %v40
  %v189 = vunpack.c.h.b16 %v40
  %v190 = vunpack.c.l.b16 %v41
  %v191 = vunpack.c.h.b16 %v41
  %v192 = vunpack.c.l.b16 %v42
  %v193 = vunpack.c.h.b16 %v42
  %v194 = vunpack.c.l.b16 %v43
  %v195 = vunpack.c.h.b16 %v43
  %v196 = vunpack.c.l.b16 %v44
  %v197 = vunpack.c.h.b16 %v44
  %v198 = vunpack.c.l.b16 %v45
  %v199 = vunpack.c.h.b16 %v45
  %v200 = vunpack.c.l.b16 %v46
  %v201 = vunpack.c.h.b16 %v46
  %v202 = vunpack.c.l.b16 %v47
  %v203 = vunpack.c.h.b16 %v47
  %v204 = vunpack.c.l.b16 %v48
  %v205 = vunpack.c.h.b16 %v48
  %v206 = vunpack.c.l.b16 %v49
  %v207 = vunpack.c.h.b16 %v49
  %v208 = vunpack.c.l.b16 %v50
  %v209 = vunpack.c.h.b16 %v50
  %v210 = vunpack.c.l.b16 %v51
  %v211 = vunpack.c.h.b16 %v51
  %v212 = vunpack.c.l.b16 %v52
  %v213 = vunpack.c.h.b16 %v52
  %v214 = vunpack.c.l.b16 %v53
  %v215 = vunpack.c.h.b16 %v53
  %v216 = vunpack.c.l.b16 %v54
  %v217 = vunpack.c.h.b16 %v54
  %v218 = vunpack.c.l.b16 %v55
  %v219 = vunpack.c.h.b16 %v55
  %v220 = vunpack.c.l.b16 %v56
  %v221 = vunpack.c.h.b16 %v56
  %v222 = vunpack.c.l.b16 %v57
  %v223 = vunpack.c.h.b16 %v57
  %v224 = vunpack.c.l.b16 %v58
  %v225 = vunpack.c.h.b16 %v58
  %v226 = vunpack.c.l.b16 %v59
  %v227 = vunpack.c.h.b16 %v59
  %v228 = vunpack.c.l.b16 %v60
  %v229 = vunpack.c.h.b16 %v60
  %v230 = vunpack.c.l.b16 %v61
  %v231 = vunpack.c.h.b16 %v61
  %v232 = vunpack.c.l.b16 %v62
  %v233 = vunpack.c.h.b16 %v62
  %v234 = vunpack.c.l.b16 %v63
  %v235 = vunpack.c.h.b16 %v63
  %v236 = vunpack.c.l.b16 %v64
  %v237 = vunpack.c.h.b16 %v64
  %v238 = vunpack.c.l.b16 %v65
  %v239 = vunpack.c.h.b16 %v65
  %v240 = vunpack.c.l.b16 %v66
  %v241 = vunpack.c.h.b16 %v66
  %v242 = vunpack.c.l.b16 %v67
  %v243 = vunpack.c.h.b16 %v67
  %v244 = vunpack.c.l.b16 %v68
  %v245 = vunpack.c.h.b16 %v68
  %v246 = vunpack.c.l.b16 %v69
  %v247 = vunpack.c.h.b16 %v69
  %v248 = vunpack.c.l.b16 %v70
  %v249 = vunpack.c.h.b16 %v70
  %v250 = vunpack.c.l.b16 %v71
  %v251 = vunpack.c.h.b16 %v71
  %v252 = vunpack.c.l.b16 %v72
  %v253 = vunpack.c.h.b16 %v72
  %v254 = vunpack.c.l.b16 %v73
  %v255 = vunpack.c.h.b16 %v73
  %v256 = vunpack.c.l.b16 %v74
  %v257 = vunpack.c.h.b16 %v74
  %v258 = vunpack.c.l.b16 %v75
  %v259 = vunpack.c.h.b16 %v75
  %v260 = vunpack.c.l.b16 %v76
  %v261 = vunpack.c.h.b16 %v76
  %v262 = vunpack.c.l.b16 %v77
  %v263 = vunpack.c.h.b16 %v77
  %v264 = vpack.c.b16 %v190, %v188
  %v265 = vpack.c.b16 %v191, %v189
  %v266 = vpack.c.b16 %v194, %v192
  %v267 = vpack.c.b16 %v195, %v193
  %v268 = vpack.c.b16 %v198, %v196
  %v269 = vpack.c.b16 %v199, %v197
  %v270 = vpack.c.b16 %v202, %v200
  %v271 = vpack.c.b16 %v203, %v201
  %v272 = vpack.c.b16 %v206, %v204
  %v273 = vpack.c.b16 %v207, %v205
  %v274 = vpack.c.b16 %v210, %v208
  %v275 = vpack.c.b16 %v211, %v209
  %v276 = vpack.c.b16 %v214, %v212
  %v277 = vpack.c.b16 %v215, %v213
  %v278 = vpack.c.b16 %v218, %v216
  %v279 = vpack.c.b16 %v219, %v217
  %v280 = vpack.c.b16 %v222, %v220
  %v281 = vpack.c.b16 %v223, %v221
  %v282 = vpack.c.b16 %v226, %v224
  %v283 = vpack.c.b16 %v227, %v225
  %v284 = vpack.c.b16 %v230, %v228
  %v285 = vpack.c.b16 %v231, %v229
  %v286 = vpack.c.b16 %v234, %v232
  %v287 = vpack.c.b16 %v235, %v233
  %v288 = vpack.c.b16 %v238, %v236
  %v289 = vpack.c.b16 %v239, %v237
  %v290 = vpack.c.b16 %v242, %v240
  %v291 = vpack.c.b16 %v243, %v241
  %v292 = vpack.c.b16 %v246, %v244
  %v293 = vpack.c.b16 %v247, %v245
  %v294 = vpack.c.b16 %v250, %v248
  %v295 = vpack.c.b16 %v251, %v249
  %v296 = vpack.c.b16 %v254, %v252
  %v297 = vpack.c.b16 %v255, %v253
  %v298 = vpack.c.b16 %v258, %v256
  %v299 = vpack.c.b16 %v259, %v257
  %v300 = vpack.c.b16 %v262, %v260
  %v301 = vpack.c.b16 %v263, %v261
  %vm338 = vcmask 359424
  %v340 = vsel %vm338, %v132, 0
  %v343 = vsel %vm338, %v135, 0
  %v346 = vsel %vm338, %v138, 0
  %v349 = vsel %vm338, %v141, 0
  %vm351 = vcmask 1045504
  %v353 = vsel %vm351, %v300, 0
  %v356 = vsel %vm351, %v301, 0
  %358 = vmatprep.subr.bf16.mxu0 %v279
  %359 = vmatpush1.bf16.msra.mxu0 %v278
  %360 = vmatprep.subr.bf16.mxu0 %v277
  %361 = vmatpush1.bf16.msra.mxu0 %v276
  %362 = vmatprep.subr.bf16.mxu0 %v275
  %363 = vmatpush1.bf16.msra.mxu0 %v274
  %364 = vmatprep.subr.bf16.mxu0 %v273
  %365 = vmatpush1.bf16.msra.mxu0 %v272
  %366 = vmatprep.subr.bf16.mxu0 %v271
  %367 = vmatpush1.bf16.msra.mxu0 %v270
  %368 = vmatprep.subr.bf16.mxu0 %v269
  %369 = vmatpush1.bf16.msra.mxu0 %v268
  %370 = vmatprep.subr.bf16.mxu0 %v267
  %371 = vmatpush1.bf16.msra.mxu0 %v266
  %372 = vmatprep.subr.bf16.mxu0 %v265
  %373 = vmatpush1.bf16.msra.mxu0 %v264
  %374 = vmatprep.subr.bf16.mxu0 %v295
  %375 = vmatpush2.bf16.msra.mxu0 %v294
  %376 = vmatprep.subr.bf16.mxu0 %v293
  %377 = vmatpush2.bf16.msra.mxu0 %v292
  %378 = vmatprep.subr.bf16.mxu0 %v291
  %379 = vmatpush2.bf16.msra.mxu0 %v290
  %380 = vmatprep.subr.bf16.mxu0 %v289
  %381 = vmatpush2.bf16.msra.mxu0 %v288
  %382 = vmatprep.subr.bf16.mxu0 %v287
  %383 = vmatpush2.bf16.msra.mxu0 %v286
  %384 = vmatprep.subr.bf16.mxu0 %v285
  %385 = vmatpush2.bf16.msra.mxu0 %v284
  %386 = vmatprep.subr.bf16.mxu0 %v283
  %387 = vmatpush2.bf16.msra.mxu0 %v282
  %388 = vmatprep.subr.bf16.mxu0 %v281
  %389 = vmatpush2.bf16.msra.mxu0 %v280
  %390 = vmatprep.mubr.bf16.mxu0 %v131
  %391 = vmatmul.mubr.bf16.gmra.mxu0 %v130
  %v392 = vpop.f32.mrf.mxu0
  %v393 = vadd.f32 %v83, %v392
  %v394 = vpop.f32.mrf.mxu0
  %v395 = vadd.f32 %v87, %v394
  %v396 = vpop.f32.mrf.mxu0
  %v397 = vadd.f32 %v83, %v396
  %v398 = vpop.f32.mrf.mxu0
  %v399 = vadd.f32 %v87, %v398
  %400 = vmatprep.mubr.bf16.mxu0 %v134
  %401 = vmatmul.mubr.bf16.gmra.mxu0 %v133
  %v402 = vpop.f32.mrf.mxu0
  %v403 = vadd.f32 %v83, %v402
  %v404 = vpop.f32.mrf.mxu0
  %v405 = vadd.f32 %v87, %v404
  %v406 = vpop.f32.mrf.mxu0
  %v407 = vadd.f32 %v83, %v406
  %v408 = vpop.f32.mrf.mxu0
  %v409 = vadd.f32 %v87, %v408
  %410 = vmatprep.mubr.bf16.mxu0 %v137
  %411 = vmatmul.mubr.bf16.gmra.mxu0 %v136
  %v412 = vpop.f32.mrf.mxu0
  %v413 = vadd.f32 %v83, %v412
  %v414 = vpop.f32.mrf.mxu0
  %v415 = vadd.f32 %v87, %v414
  %v416 = vpop.f32.mrf.mxu0
  %v417 = vadd.f32 %v83, %v416
  %v418 = vpop.f32.mrf.mxu0
  %v419 = vadd.f32 %v87, %v418
  %420 = vmatprep.mubr.bf16.mxu0 %v140
  %421 = vmatmul.mubr.bf16.gmra.mxu0 %v139
  %v422 = vpop.f32.mrf.mxu0
  %v423 = vadd.f32 %v83, %v422
  %v424 = vpop.f32.mrf.mxu0
  %v425 = vadd.f32 %v87, %v424
  %v426 = vpop.f32.mrf.mxu0
  %v427 = vadd.f32 %v83, %v426
  %v428 = vpop.f32.mrf.mxu0
  %v429 = vadd.f32 %v87, %v428
  %430 = vdwg.mxu0
  %431 = vmatprep.subr.bf16.mxu0 0
  %432 = vmatpush1.bf16.msra.mxu0 0
  %433 = vmatprep.subr.bf16.mxu0 0
  %434 = vmatpush1.bf16.msra.mxu0 0
  %435 = vmatprep.subr.bf16.mxu0 0
  %436 = vmatpush1.bf16.msra.mxu0 0
  %437 = vmatprep.subr.bf16.mxu0 0
  %438 = vmatpush1.bf16.msra.mxu0 0
  %439 = vmatprep.subr.bf16.mxu0 0
  %440 = vmatpush1.bf16.msra.mxu0 0
  %441 = vmatprep.subr.bf16.mxu0 %v356
  %442 = vmatpush1.bf16.msra.mxu0 %v353
  %443 = vmatprep.subr.bf16.mxu0 %v299
  %444 = vmatpush1.bf16.msra.mxu0 %v298
  %445 = vmatprep.subr.bf16.mxu0 %v297
  %446 = vmatpush1.bf16.msra.mxu0 %v296
  %447 = vmatprep.subr.bf16.mxu0 0
  %448 = vmatpush2.bf16.msra.mxu0 0
  %449 = vmatprep.subr.bf16.mxu0 0
  %450 = vmatpush2.bf16.msra.mxu0 0
  %451 = vmatprep.subr.bf16.mxu0 0
  %452 = vmatpush2.bf16.msra.mxu0 0
  %453 = vmatprep.subr.bf16.mxu0 0
  %454 = vmatpush2.bf16.msra.mxu0 0
  %455 = vmatprep.subr.bf16.mxu0 0
  %456 = vmatpush2.bf16.msra.mxu0 0
  %457 = vmatprep.subr.bf16.mxu0 0
  %458 = vmatpush2.bf16.msra.mxu0 0
  %459 = vmatprep.subr.bf16.mxu0 0
  %460 = vmatpush2.bf16.msra.mxu0 0
  %461 = vmatprep.subr.bf16.mxu0 0
  %462 = vmatpush2.bf16.msra.mxu0 0
  %463 = vmatprep.mubr.bf16.mxu0 0
  %464 = vmatmul.mubr.bf16.gmra.mxu0 %v340
  %v465 = vpop.f32.mrf.mxu0
  %v466 = vadd.f32 %v393, %v465
  %v467 = vpop.f32.mrf.mxu0
  %v468 = vadd.f32 %v395, %v467
  %v469 = vpop.f32.mrf.mxu0
  %v470 = vadd.f32 %v397, %v469
  %v471 = vpop.f32.mrf.mxu0
  %v472 = vadd.f32 %v399, %v471
  %473 = vmatprep.mubr.bf16.mxu0 0
  %474 = vmatmul.mubr.bf16.gmra.mxu0 %v343
  %v475 = vpop.f32.mrf.mxu0
  %v476 = vadd.f32 %v403, %v475
  %v477 = vpop.f32.mrf.mxu0
  %v478 = vadd.f32 %v405, %v477
  %v479 = vpop.f32.mrf.mxu0
  %v480 = vadd.f32 %v407, %v479
  %v481 = vpop.f32.mrf.mxu0
  %v482 = vadd.f32 %v409, %v481
  %483 = vmatprep.mubr.bf16.mxu0 0
  %484 = vmatmul.mubr.bf16.gmra.mxu0 %v346
  %v485 = vpop.f32.mrf.mxu0
  %v486 = vadd.f32 %v413, %v485
  %v487 = vpop.f32.mrf.mxu0
  %v488 = vadd.f32 %v415, %v487
  %v489 = vpop.f32.mrf.mxu0
  %v490 = vadd.f32 %v417, %v489
  %v491 = vpop.f32.mrf.mxu0
  %v492 = vadd.f32 %v419, %v491
  %493 = vmatprep.mubr.bf16.mxu0 0
  %494 = vmatmul.mubr.bf16.gmra.mxu0 %v349
  %v495 = vpop.f32.mrf.mxu0
  %v496 = vadd.f32 %v423, %v495
  %v497 = vpop.f32.mrf.mxu0
  %v498 = vadd.f32 %v425, %v497
  %v499 = vpop.f32.mrf.mxu0
  %v500 = vadd.f32 %v427, %v499
  %v501 = vpop.f32.mrf.mxu0
  %v502 = vadd.f32 %v429, %v501
  %503 = vdwg.mxu0
  %v504 = vld [vmem:[%s3] sm:$0xff]
  %v505 = vld [vmem:[%s3 + $0x8] sm:$0xff]
  %v506 = vld [vmem:[%s3 + $0x10] sm:$0xff]
  %v507 = vld [vmem:[%s3 + $0x18] sm:$0xff]
  %v508 = vld [vmem:[%s3 + $0x20] sm:$0xff]
  %v509 = vld [vmem:[%s3 + $0x28] sm:$0xff]
  %v510 = vld [vmem:[%s3 + $0x30] sm:$0xff]
  %v511 = vld [vmem:[%s3 + $0x38] sm:$0xff]
  %v512 = vld [vmem:[%s3 + $0x40] sm:$0xff]
  %v513 = vld [vmem:[%s3 + $0x48] sm:$0xff]
  %v514 = vld [vmem:[%s3 + $0x50] sm:$0xff]
  %v515 = vld [vmem:[%s3 + $0x58] sm:$0xff]
  %v516 = vld [vmem:[%s3 + $0x60] sm:$0xff]
  %v517 = vld [vmem:[%s3 + $0x68] sm:$0xff]
  %v518 = vld [vmem:[%s3 + $0x70] sm:$0xff]
  %v519 = vld [vmem:[%s3 + $0x78] sm:$0xff]
  %v520 = vlaneseq
  %v521 = vand.u32 %v520, 127
  %v522 = vadd.s32 %v521, 128
  %vm523 = vcmp.lt.s32.totalorder %v521, 0
  %v524 = vsub.s32 0, %v521
  %v525 = vsel %vm523, %v524, %v521
  %v526 = vshrl.u32 %v525, 6
  %v527 = vand.u32 %v525, 63
  %v528 = vsub.s32 0, %v527
  %v529 = vsel %vm523, %v528, %v527
  %vm530 = vcmp.lt.s32.totalorder %v522, 0
  %v531 = vsub.s32 0, %v522
  %v532 = vsel %vm530, %v531, %v522
  %v533 = vshrl.u32 %v532, 6
  %v534 = vand.u32 %v532, 63
  %v535 = vsub.s32 0, %v534
  %v536 = vsel %vm530, %v535, %v534
  %vm537 = vcmp.ne.s32.totalorder %v529, 0
  %vm538 = vcmp.ne.s32.totalorder %v536, 0
  %vm539 = vcmp.lt.s32.totalorder %v529, 0
  %vm540 = vcmp.lt.s32.totalorder %v536, 0
  %vm541 = vmand %vm539, %vm537
  %vm542 = vmand %vm540, %vm538
  %v543 = vadd.s32 %v529, 64
  %v544 = vadd.s32 %v536, 64
  %v545 = vsel %vm541, %v543, %v529
  %v546 = vsel %vm542, %v544, %v536
  %vm547 = vcmp.lt.s32.totalorder %v545, 32
  %vm548 = vcmp.lt.s32.totalorder %v546, 32
  %v565 = vrot.slane %v470, 7
  %vm566 = vcmask 1041409
  %v567 = vsel %vm566, %v565, %v466
  %v568 = vrot.slane %v476, 6
  %vm569 = vcmask 1042434
  %v570 = vsel %vm569, %v568, %v567
  %v571 = vrot.slane %v480, 5
  %vm572 = vcmask 1043459
  %v573 = vsel %vm572, %v571, %v570
  %v574 = vrot.slane %v486, 4
  %vm575 = vcmask 1044484
  %v576 = vsel %vm575, %v574, %v573
  %v577 = vrot.slane %v490, 3
  %vm578 = vcmask 1045509
  %v579 = vsel %vm578, %v577, %v576
  %v580 = vrot.slane %v496, 2
  %vm581 = vcmask 1046534
  %v582 = vsel %vm581, %v580, %v579
  %v583 = vrot.slane %v500, 1
  %vm584 = vcmask 1047559
  %v585 = vsel %vm584, %v583, %v582
  %v586 = vrot.slane %v472, 7
  %v587 = vsel %vm566, %v586, %v468
  %v588 = vrot.slane %v478, 6
  %v589 = vsel %vm569, %v588, %v587
  %v590 = vrot.slane %v482, 5
  %v591 = vsel %vm572, %v590, %v589
  %v592 = vrot.slane %v488, 4
  %v593 = vsel %vm575, %v592, %v591
  %v594 = vrot.slane %v492, 3
  %v595 = vsel %vm578, %v594, %v593
  %v596 = vrot.slane %v498, 2
  %v597 = vsel %vm581, %v596, %v595
  %v598 = vrot.slane %v502, 1
  %v599 = vsel %vm584, %v598, %v597
  %v602 = vrot.slane %v466, 7
  %v603 = vrot.slane %v470, 6
  %v604 = vsel %vm566, %v603, %v602
  %v605 = vrot.slane %v476, 5
  %v606 = vsel %vm569, %v605, %v604
  %v607 = vrot.slane %v480, 4
  %v608 = vsel %vm572, %v607, %v606
  %v609 = vrot.slane %v486, 3
  %v610 = vsel %vm575, %v609, %v608
  %v611 = vrot.slane %v490, 2
  %v612 = vsel %vm578, %v611, %v610
  %v613 = vrot.slane %v496, 1
  %v614 = vsel %vm581, %v613, %v612
  %v615 = vsel %vm584, %v500, %v614
  %v616 = vrot.slane %v468, 7
  %v617 = vrot.slane %v472, 6
  %v618 = vsel %vm566, %v617, %v616
  %v619 = vrot.slane %v478, 5
  %v620 = vsel %vm569, %v619, %v618
  %v621 = vrot.slane %v482, 4
  %v622 = vsel %vm572, %v621, %v620
  %v623 = vrot.slane %v488, 3
  %v624 = vsel %vm575, %v623, %v622
  %v625 = vrot.slane %v492, 2
  %v626 = vsel %vm578, %v625, %v624
  %v627 = vrot.slane %v498, 1
  %v628 = vsel %vm581, %v627, %v626
  %v629 = vsel %vm584, %v502, %v628
  %v632 = vsel %vm547, %v585, %v615
  %v633 = vsel %vm548, %v599, %v629
  %v634 = vrot.slane %v466, 1
  %v635 = vsel %vm566, %v470, %v634
  %v636 = vrot.slane %v476, 7
  %v637 = vsel %vm569, %v636, %v635
  %v638 = vrot.slane %v480, 6
  %v639 = vsel %vm572, %v638, %v637
  %v640 = vrot.slane %v486, 5
  %v641 = vsel %vm575, %v640, %v639
  %v642 = vrot.slane %v490, 4
  %v643 = vsel %vm578, %v642, %v641
  %v644 = vrot.slane %v496, 3
  %v645 = vsel %vm581, %v644, %v643
  %v646 = vrot.slane %v500, 2
  %v647 = vsel %vm584, %v646, %v645
  %v648 = vrot.slane %v468, 1
  %v649 = vsel %vm566, %v472, %v648
  %v650 = vrot.slane %v478, 7
  %v651 = vsel %vm569, %v650, %v649
  %v652 = vrot.slane %v482, 6
  %v653 = vsel %vm572, %v652, %v651
  %v654 = vrot.slane %v488, 5
  %v655 = vsel %vm575, %v654, %v653
  %v656 = vrot.slane %v492, 4
  %v657 = vsel %vm578, %v656, %v655
  %v658 = vrot.slane %v498, 3
  %v659 = vsel %vm581, %v658, %v657
  %v660 = vrot.slane %v502, 2
  %v661 = vsel %vm584, %v660, %v659
  %v664 = vrot.slane %v466, 6
  %v665 = vrot.slane %v470, 5
  %v666 = vsel %vm566, %v665, %v664
  %v667 = vrot.slane %v476, 4
  %v668 = vsel %vm569, %v667, %v666
  %v669 = vrot.slane %v480, 3
  %v670 = vsel %vm572, %v669, %v668
  %v671 = vrot.slane %v486, 2
  %v672 = vsel %vm575, %v671, %v670
  %v673 = vrot.slane %v490, 1
  %v674 = vsel %vm578, %v673, %v672
  %v675 = vsel %vm581, %v496, %v674
  %v676 = vrot.slane %v500, 7
  %v677 = vsel %vm584, %v676, %v675
  %v678 = vrot.slane %v468, 6
  %v679 = vrot.slane %v472, 5
  %v680 = vsel %vm566, %v679, %v678
  %v681 = vrot.slane %v478, 4
  %v682 = vsel %vm569, %v681, %v680
  %v683 = vrot.slane %v482, 3
  %v684 = vsel %vm572, %v683, %v682
  %v685 = vrot.slane %v488, 2
  %v686 = vsel %vm575, %v685, %v684
  %v687 = vrot.slane %v492, 1
  %v688 = vsel %vm578, %v687, %v686
  %v689 = vsel %vm581, %v498, %v688
  %v690 = vrot.slane %v502, 7
  %v691 = vsel %vm584, %v690, %v689
  %v694 = vsel %vm547, %v647, %v677
  %v695 = vsel %vm548, %v661, %v691
  %v696 = vrot.slane %v466, 2
  %v697 = vrot.slane %v470, 1
  %v698 = vsel %vm566, %v697, %v696
  %v699 = vsel %vm569, %v476, %v698
  %v700 = vrot.slane %v480, 7
  %v701 = vsel %vm572, %v700, %v699
  %v702 = vrot.slane %v486, 6
  %v703 = vsel %vm575, %v702, %v701
  %v704 = vrot.slane %v490, 5
  %v705 = vsel %vm578, %v704, %v703
  %v706 = vrot.slane %v496, 4
  %v707 = vsel %vm581, %v706, %v705
  %v708 = vrot.slane %v500, 3
  %v709 = vsel %vm584, %v708, %v707
  %v710 = vrot.slane %v468, 2
  %v711 = vrot.slane %v472, 1
  %v712 = vsel %vm566, %v711, %v710
  %v713 = vsel %vm569, %v478, %v712
  %v714 = vrot.slane %v482, 7
  %v715 = vsel %vm572, %v714, %v713
  %v716 = vrot.slane %v488, 6
  %v717 = vsel %vm575, %v716, %v715
  %v718 = vrot.slane %v492, 5
  %v719 = vsel %vm578, %v718, %v717
  %v720 = vrot.slane %v498, 4
  %v721 = vsel %vm581, %v720, %v719
  %v722 = vrot.slane %v502, 3
  %v723 = vsel %vm584, %v722, %v721
  %v726 = vrot.slane %v466, 5
  %v727 = vrot.slane %v470, 4
  %v728 = vsel %vm566, %v727, %v726
  %v729 = vrot.slane %v476, 3
  %v730 = vsel %vm569, %v729, %v728
  %v731 = vrot.slane %v480, 2
  %v732 = vsel %vm572, %v731, %v730
  %v733 = vrot.slane %v486, 1
  %v734 = vsel %vm575, %v733, %v732
  %v735 = vsel %vm578, %v490, %v734
  %v736 = vrot.slane %v496, 7
  %v737 = vsel %vm581, %v736, %v735
  %v738 = vrot.slane %v500, 6
  %v739 = vsel %vm584, %v738, %v737
  %v740 = vrot.slane %v468, 5
  %v741 = vrot.slane %v472, 4
  %v742 = vsel %vm566, %v741, %v740
  %v743 = vrot.slane %v478, 3
  %v744 = vsel %vm569, %v743, %v742
  %v745 = vrot.slane %v482, 2
  %v746 = vsel %vm572, %v745, %v744
  %v747 = vrot.slane %v488, 1
  %v748 = vsel %vm575, %v747, %v746
  %v749 = vsel %vm578, %v492, %v748
  %v750 = vrot.slane %v498, 7
  %v751 = vsel %vm581, %v750, %v749
  %v752 = vrot.slane %v502, 6
  %v753 = vsel %vm584, %v752, %v751
  %v756 = vsel %vm547, %v709, %v739
  %v757 = vsel %vm548, %v723, %v753
  %v758 = vrot.slane %v466, 3
  %v759 = vrot.slane %v470, 2
  %v760 = vsel %vm566, %v759, %v758
  %v761 = vrot.slane %v476, 1
  %v762 = vsel %vm569, %v761, %v760
  %v763 = vsel %vm572, %v480, %v762
  %v764 = vrot.slane %v486, 7
  %v765 = vsel %vm575, %v764, %v763
  %v766 = vrot.slane %v490, 6
  %v767 = vsel %vm578, %v766, %v765
  %v768 = vrot.slane %v496, 5
  %v769 = vsel %vm581, %v768, %v767
  %v770 = vrot.slane %v500, 4
  %v771 = vsel %vm584, %v770, %v769
  %v772 = vrot.slane %v468, 3
  %v773 = vrot.slane %v472, 2
  %v774 = vsel %vm566, %v773, %v772
  %v775 = vrot.slane %v478, 1
  %v776 = vsel %vm569, %v775, %v774
  %v777 = vsel %vm572, %v482, %v776
  %v778 = vrot.slane %v488, 7
  %v779 = vsel %vm575, %v778, %v777
  %v780 = vrot.slane %v492, 6
  %v781 = vsel %vm578, %v780, %v779
  %v782 = vrot.slane %v498, 5
  %v783 = vsel %vm581, %v782, %v781
  %v784 = vrot.slane %v502, 4
  %v785 = vsel %vm584, %v784, %v783
  %v788 = vrot.slane %v466, 4
  %v789 = vrot.slane %v470, 3
  %v790 = vsel %vm566, %v789, %v788
  %v791 = vrot.slane %v476, 2
  %v792 = vsel %vm569, %v791, %v790
  %v793 = vrot.slane %v480, 1
  %v794 = vsel %vm572, %v793, %v792
  %v795 = vsel %vm575, %v486, %v794
  %v796 = vrot.slane %v490, 7
  %v797 = vsel %vm578, %v796, %v795
  %v798 = vrot.slane %v496, 6
  %v799 = vsel %vm581, %v798, %v797
  %v800 = vrot.slane %v500, 5
  %v801 = vsel %vm584, %v800, %v799
  %v802 = vrot.slane %v468, 4
  %v803 = vrot.slane %v472, 3
  %v804 = vsel %vm566, %v803, %v802
  %v805 = vrot.slane %v478, 2
  %v806 = vsel %vm569, %v805, %v804
  %v807 = vrot.slane %v482, 1
  %v808 = vsel %vm572, %v807, %v806
  %v809 = vsel %vm575, %v488, %v808
  %v810 = vrot.slane %v492, 7
  %v811 = vsel %vm578, %v810, %v809
  %v812 = vrot.slane %v498, 6
  %v813 = vsel %vm581, %v812, %v811
  %v814 = vrot.slane %v502, 5
  %v815 = vsel %vm584, %v814, %v813
  %v818 = vsel %vm547, %v771, %v801
  %v819 = vsel %vm548, %v785, %v815
  %v820 = vsel %vm547, %v801, %v771
  %v821 = vsel %vm548, %v815, %v785
  %v822 = vsel %vm547, %v739, %v709
  %v823 = vsel %vm548, %v753, %v723
  %v824 = vsel %vm547, %v677, %v647
  %v825 = vsel %vm548, %v691, %v661
  %v826 = vsel %vm547, %v615, %v585
  %v827 = vsel %vm548, %v629, %v599
  %vm828 = vcmask 523264
  %v830 = vsel %vm828, 0.0, 0
  %832 = vmatprep.subr.mxu0 0.0
  %833 = vmatpush1.msra.mxu0 0.0
  %834 = vmatprep.subr.mxu0 0.0
  %835 = vmatpush1.msra.mxu0 0.0
  %836 = vmatprep.subr.mxu0 0.0
  %837 = vmatpush1.msra.mxu0 0.0
  %838 = vmatprep.subr.mxu0 0.0
  %839 = vmatpush1.msra.mxu0 0.0
  %840 = vmatprep.subr.mxu0 0.0
  %841 = vmatpush1.msra.mxu0 0.0
  %842 = vmatprep.subr.mxu0 0.0
  %843 = vmatpush1.msra.mxu0 0.0
  %844 = vmatprep.subr.mxu0 0.0
  %845 = vmatpush1.msra.mxu0 0.0
  %846 = vmatprep.subr.mxu0 0.0
  %847 = vmatpush1.msra.mxu0 0.0
  %848 = vmatprep.subr.mxu0 %v519
  %849 = vmatpush1.msra.mxu0 %v518
  %850 = vmatprep.subr.mxu0 %v517
  %851 = vmatpush1.msra.mxu0 %v516
  %852 = vmatprep.subr.mxu0 %v515
  %853 = vmatpush1.msra.mxu0 %v514
  %854 = vmatprep.subr.mxu0 %v513
  %855 = vmatpush1.msra.mxu0 %v512
  %856 = vmatprep.subr.mxu0 %v511
  %857 = vmatpush1.msra.mxu0 %v510
  %858 = vmatprep.subr.mxu0 %v509
  %859 = vmatpush1.msra.mxu0 %v508
  %860 = vmatprep.subr.mxu0 %v507
  %861 = vmatpush1.msra.mxu0 %v506
  %862 = vmatprep.subr.mxu0 %v505
  %863 = vmatpush1.msra.mxu0 %v504
  %864 = vmatprep.subr.mxu0 0.0
  %865 = vmatpush2.msra.mxu0 0.0
  %866 = vmatprep.subr.mxu0 0.0
  %867 = vmatpush2.msra.mxu0 0.0
  %868 = vmatprep.subr.mxu0 0.0
  %869 = vmatpush2.msra.mxu0 0.0
  %870 = vmatprep.subr.mxu0 0.0
  %871 = vmatpush2.msra.mxu0 0.0
  %872 = vmatprep.subr.mxu0 0.0
  %873 = vmatpush2.msra.mxu0 0.0
  %874 = vmatprep.subr.mxu0 0.0
  %875 = vmatpush2.msra.mxu0 0.0
  %876 = vmatprep.subr.mxu0 0.0
  %877 = vmatpush2.msra.mxu0 0.0
  %878 = vmatprep.subr.mxu0 0.0
  %879 = vmatpush2.msra.mxu0 0.0
  %880 = vmatprep.subr.mxu0 0.0
  %881 = vmatpush2.msra.mxu0 0.0
  %882 = vmatprep.subr.mxu0 0.0
  %883 = vmatpush2.msra.mxu0 0.0
  %884 = vmatprep.subr.mxu0 0.0
  %885 = vmatpush2.msra.mxu0 0.0
  %886 = vmatprep.subr.mxu0 0.0
  %887 = vmatpush2.msra.mxu0 0.0
  %888 = vmatprep.subr.mxu0 0.0
  %889 = vmatpush2.msra.mxu0 0.0
  %890 = vmatprep.subr.mxu0 0.0
  %891 = vmatpush2.msra.mxu0 0.0
  %892 = vmatprep.subr.mxu0 0.0
  %893 = vmatpush2.msra.mxu0 0.0
  %894 = vmatprep.subr.mxu0 0.0
  %895 = vmatpush2.msra.mxu0 0.0
  %896 = vmatprep.mubr.f32.mxu0 0.0
  %897 = vmatmul.mubr.f32.gmra.mxu0 %v830
  %v898 = vpop.f32.mrf.mxu0
  %v899 = vadd.f32 0.0, %v898
  %v900 = vpop.f32.mrf.mxu0
  %v901 = vadd.f32 0.0, %v900
  %902 = vdwg.mxu0
  %v903 = vadd.f32 %v632, %v899
  %v904 = vadd.f32 %v633, %v901
  %v905 = vxor.u32 %v903, 2147483648
  %v906 = vmul.f32 %v905, 1.442695
  %v907 = vpow.pop %v906
  %v908 = vadd.f32 %v907, 1.0
  %v909 = vrcp.pop %v908
  %v910 = vmul.f32 1.0, %v909
  %v911 = vtanh.pop %v904
  %v912 = vxor.u32 %v904, 2147483648
  %v913 = vmul.f32 %v912, 1.442695
  %v914 = vpow.pop %v913
  %v915 = vadd.f32 %v914, 1.0
  %v916 = vrcp.pop %v915
  %v917 = vmul.f32 1.0, %v916
  %v918 = vmul.f32 %v910, 0.0
  %v919 = vmul.f32 %v910, %v911
  %921 = vrot.lane.b32.xlu0 %v919, 64
  %v922 = vpop.permute.xlu0 %921
  %v924 = vadd.f32 %v918, %v922
  %v925 = vtanh.pop %v924
  %v926 = vmul.f32 %v917, %v925
  %928 = vrot.lane.b32.xlu0 %v926, 64
  %v929 = vpop.permute.xlu0 %928
  %v930 = vsel %vm828, %v929, 0
  %932 = vmatprep.subr.mxu0 0.0
  %933 = vmatpush1.msra.mxu0 0.0
  %934 = vmatprep.subr.mxu0 0.0
  %935 = vmatpush1.msra.mxu0 0.0
  %936 = vmatprep.subr.mxu0 0.0
  %937 = vmatpush1.msra.mxu0 0.0
  %938 = vmatprep.subr.mxu0 0.0
  %939 = vmatpush1.msra.mxu0 0.0
  %940 = vmatprep.subr.mxu0 0.0
  %941 = vmatpush1.msra.mxu0 0.0
  %942 = vmatprep.subr.mxu0 0.0
  %943 = vmatpush1.msra.mxu0 0.0
  %944 = vmatprep.subr.mxu0 0.0
  %945 = vmatpush1.msra.mxu0 0.0
  %946 = vmatprep.subr.mxu0 0.0
  %947 = vmatpush1.msra.mxu0 0.0
  %948 = vmatprep.subr.mxu0 %v519
  %949 = vmatpush1.msra.mxu0 %v518
  %950 = vmatprep.subr.mxu0 %v517
  %951 = vmatpush1.msra.mxu0 %v516
  %952 = vmatprep.subr.mxu0 %v515
  %953 = vmatpush1.msra.mxu0 %v514
  %954 = vmatprep.subr.mxu0 %v513
  %955 = vmatpush1.msra.mxu0 %v512
  %956 = vmatprep.subr.mxu0 %v511
  %957 = vmatpush1.msra.mxu0 %v510
  %958 = vmatprep.subr.mxu0 %v509
  %959 = vmatpush1.msra.mxu0 %v508
  %960 = vmatprep.subr.mxu0 %v507
  %961 = vmatpush1.msra.mxu0 %v506
  %962 = vmatprep.subr.mxu0 %v505
  %963 = vmatpush1.msra.mxu0 %v504
  %964 = vmatprep.subr.mxu0 0.0
  %965 = vmatpush2.msra.mxu0 0.0
  %966 = vmatprep.subr.mxu0 0.0
  %967 = vmatpush2.msra.mxu0 0.0
  %968 = vmatprep.subr.mxu0 0.0
  %969 = vmatpush2.msra.mxu0 0.0
  %970 = vmatprep.subr.mxu0 0.0
  %971 = vmatpush2.msra.mxu0 0.0
  %972 = vmatprep.subr.mxu0 0.0
  %973 = vmatpush2.msra.mxu0 0.0
  %974 = vmatprep.subr.mxu0 0.0
  %975 = vmatpush2.msra.mxu0 0.0
  %976 = vmatprep.subr.mxu0 0.0
  %977 = vmatpush2.msra.mxu0 0.0
  %978 = vmatprep.subr.mxu0 0.0
  %979 = vmatpush2.msra.mxu0 0.0
  %980 = vmatprep.subr.mxu0 0.0
  %981 = vmatpush2.msra.mxu0 0.0
  %982 = vmatprep.subr.mxu0 0.0
  %983 = vmatpush2.msra.mxu0 0.0
  %984 = vmatprep.subr.mxu0 0.0
  %985 = vmatpush2.msra.mxu0 0.0
  %986 = vmatprep.subr.mxu0 0.0
  %987 = vmatpush2.msra.mxu0 0.0
  %988 = vmatprep.subr.mxu0 0.0
  %989 = vmatpush2.msra.mxu0 0.0
  %990 = vmatprep.subr.mxu0 0.0
  %991 = vmatpush2.msra.mxu0 0.0
  %992 = vmatprep.subr.mxu0 0.0
  %993 = vmatpush2.msra.mxu0 0.0
  %994 = vmatprep.subr.mxu0 0.0
  %995 = vmatpush2.msra.mxu0 0.0
  %996 = vmatprep.mubr.f32.mxu0 0.0
  %997 = vmatmul.mubr.f32.gmra.mxu0 %v930
  %v998 = vpop.f32.mrf.mxu0
  %v999 = vadd.f32 0.0, %v998
  %v1000 = vpop.f32.mrf.mxu0
  %v1001 = vadd.f32 0.0, %v1000
  %1002 = vdwg.mxu0
  %v1003 = vadd.f32 %v694, %v999
  %v1004 = vadd.f32 %v695, %v1001
  %v1005 = vxor.u32 %v1003, 2147483648
  %v1006 = vmul.f32 %v1005, 1.442695
  %v1007 = vpow.pop %v1006
  %v1008 = vadd.f32 %v1007, 1.0
  %v1009 = vrcp.pop %v1008
  %v1010 = vmul.f32 1.0, %v1009
  %v1011 = vtanh.pop %v1004
  %v1012 = vxor.u32 %v1004, 2147483648
  %v1013 = vmul.f32 %v1012, 1.442695
  %v1014 = vpow.pop %v1013
  %v1015 = vadd.f32 %v1014, 1.0
  %v1016 = vrcp.pop %v1015
  %v1017 = vmul.f32 1.0, %v1016
  %v1018 = vmul.f32 %v1010, %v924
  %v1019 = vmul.f32 %v1010, %v1011
  %1021 = vrot.lane.b32.xlu0 %v1019, 64
  %v1022 = vpop.permute.xlu0 %1021
  %v1024 = vadd.f32 %v1018, %v1022
  %v1025 = vtanh.pop %v1024
  %v1026 = vmul.f32 %v1017, %v1025
  %1028 = vrot.lane.b32.xlu0 %v1026, 64
  %v1029 = vpop.permute.xlu0 %1028
  %v1030 = vsel %vm828, %v1029, 0
  %1032 = vmatprep.subr.mxu0 0.0
  %1033 = vmatpush1.msra.mxu0 0.0
  %1034 = vmatprep.subr.mxu0 0.0
  %1035 = vmatpush1.msra.mxu0 0.0
  %1036 = vmatprep.subr.mxu0 0.0
  %1037 = vmatpush1.msra.mxu0 0.0
  %1038 = vmatprep.subr.mxu0 0.0
  %1039 = vmatpush1.msra.mxu0 0.0
  %1040 = vmatprep.subr.mxu0 0.0
  %1041 = vmatpush1.msra.mxu0 0.0
  %1042 = vmatprep.subr.mxu0 0.0
  %1043 = vmatpush1.msra.mxu0 0.0
  %1044 = vmatprep.subr.mxu0 0.0
  %1045 = vmatpush1.msra.mxu0 0.0
  %1046 = vmatprep.subr.mxu0 0.0
  %1047 = vmatpush1.msra.mxu0 0.0
  %1048 = vmatprep.subr.mxu0 %v519
  %1049 = vmatpush1.msra.mxu0 %v518
  %1050 = vmatprep.subr.mxu0 %v517
  %1051 = vmatpush1.msra.mxu0 %v516
  %1052 = vmatprep.subr.mxu0 %v515
  %1053 = vmatpush1.msra.mxu0 %v514
  %1054 = vmatprep.subr.mxu0 %v513
  %1055 = vmatpush1.msra.mxu0 %v512
  %1056 = vmatprep.subr.mxu0 %v511
  %1057 = vmatpush1.msra.mxu0 %v510
  %1058 = vmatprep.subr.mxu0 %v509
  %1059 = vmatpush1.msra.mxu0 %v508
  %1060 = vmatprep.subr.mxu0 %v507
  %1061 = vmatpush1.msra.mxu0 %v506
  %1062 = vmatprep.subr.mxu0 %v505
  %1063 = vmatpush1.msra.mxu0 %v504
  %1064 = vmatprep.subr.mxu0 0.0
  %1065 = vmatpush2.msra.mxu0 0.0
  %1066 = vmatprep.subr.mxu0 0.0
  %1067 = vmatpush2.msra.mxu0 0.0
  %1068 = vmatprep.subr.mxu0 0.0
  %1069 = vmatpush2.msra.mxu0 0.0
  %1070 = vmatprep.subr.mxu0 0.0
  %1071 = vmatpush2.msra.mxu0 0.0
  %1072 = vmatprep.subr.mxu0 0.0
  %1073 = vmatpush2.msra.mxu0 0.0
  %1074 = vmatprep.subr.mxu0 0.0
  %1075 = vmatpush2.msra.mxu0 0.0
  %1076 = vmatprep.subr.mxu0 0.0
  %1077 = vmatpush2.msra.mxu0 0.0
  %1078 = vmatprep.subr.mxu0 0.0
  %1079 = vmatpush2.msra.mxu0 0.0
  %1080 = vmatprep.subr.mxu0 0.0
  %1081 = vmatpush2.msra.mxu0 0.0
  %1082 = vmatprep.subr.mxu0 0.0
  %1083 = vmatpush2.msra.mxu0 0.0
  %1084 = vmatprep.subr.mxu0 0.0
  %1085 = vmatpush2.msra.mxu0 0.0
  %1086 = vmatprep.subr.mxu0 0.0
  %1087 = vmatpush2.msra.mxu0 0.0
  %1088 = vmatprep.subr.mxu0 0.0
  %1089 = vmatpush2.msra.mxu0 0.0
  %1090 = vmatprep.subr.mxu0 0.0
  %1091 = vmatpush2.msra.mxu0 0.0
  %1092 = vmatprep.subr.mxu0 0.0
  %1093 = vmatpush2.msra.mxu0 0.0
  %1094 = vmatprep.subr.mxu0 0.0
  %1095 = vmatpush2.msra.mxu0 0.0
  %1096 = vmatprep.mubr.f32.mxu0 0.0
  %1097 = vmatmul.mubr.f32.gmra.mxu0 %v1030
  %v1098 = vpop.f32.mrf.mxu0
  %v1099 = vadd.f32 0.0, %v1098
  %v1100 = vpop.f32.mrf.mxu0
  %v1101 = vadd.f32 0.0, %v1100
  %1102 = vdwg.mxu0
  %v1103 = vadd.f32 %v756, %v1099
  %v1104 = vadd.f32 %v757, %v1101
  %v1105 = vxor.u32 %v1103, 2147483648
  %v1106 = vmul.f32 %v1105, 1.442695
  %v1107 = vpow.pop %v1106
  %v1108 = vadd.f32 %v1107, 1.0
  %v1109 = vrcp.pop %v1108
  %v1110 = vmul.f32 1.0, %v1109
  %v1111 = vtanh.pop %v1104
  %v1112 = vxor.u32 %v1104, 2147483648
  %v1113 = vmul.f32 %v1112, 1.442695
  %v1114 = vpow.pop %v1113
  %v1115 = vadd.f32 %v1114, 1.0
  %v1116 = vrcp.pop %v1115
  %v1117 = vmul.f32 1.0, %v1116
  %v1118 = vmul.f32 %v1110, %v1024
  %v1119 = vmul.f32 %v1110, %v1111
  %1121 = vrot.lane.b32.xlu0 %v1119, 64
  %v1122 = vpop.permute.xlu0 %1121
  %v1124 = vadd.f32 %v1118, %v1122
  %v1125 = vtanh.pop %v1124
  %v1126 = vmul.f32 %v1117, %v1125
  %1128 = vrot.lane.b32.xlu0 %v1126, 64
  %v1129 = vpop.permute.xlu0 %1128
  %v1130 = vsel %vm828, %v1129, 0
  %1132 = vmatprep.subr.mxu0 0.0
  %1133 = vmatpush1.msra.mxu0 0.0
  %1134 = vmatprep.subr.mxu0 0.0
  %1135 = vmatpush1.msra.mxu0 0.0
  %1136 = vmatprep.subr.mxu0 0.0
  %1137 = vmatpush1.msra.mxu0 0.0
  %1138 = vmatprep.subr.mxu0 0.0
  %1139 = vmatpush1.msra.mxu0 0.0
  %1140 = vmatprep.subr.mxu0 0.0
  %1141 = vmatpush1.msra.mxu0 0.0
  %1142 = vmatprep.subr.mxu0 0.0
  %1143 = vmatpush1.msra.mxu0 0.0
  %1144 = vmatprep.subr.mxu0 0.0
  %1145 = vmatpush1.msra.mxu0 0.0
  %1146 = vmatprep.subr.mxu0 0.0
  %1147 = vmatpush1.msra.mxu0 0.0
  %1148 = vmatprep.subr.mxu0 %v519
  %1149 = vmatpush1.msra.mxu0 %v518
  %1150 = vmatprep.subr.mxu0 %v517
  %1151 = vmatpush1.msra.mxu0 %v516
  %1152 = vmatprep.subr.mxu0 %v515
  %1153 = vmatpush1.msra.mxu0 %v514
  %1154 = vmatprep.subr.mxu0 %v513
  %1155 = vmatpush1.msra.mxu0 %v512
  %1156 = vmatprep.subr.mxu0 %v511
  %1157 = vmatpush1.msra.mxu0 %v510
  %1158 = vmatprep.subr.mxu0 %v509
  %1159 = vmatpush1.msra.mxu0 %v508
  %1160 = vmatprep.subr.mxu0 %v507
  %1161 = vmatpush1.msra.mxu0 %v506
  %1162 = vmatprep.subr.mxu0 %v505
  %1163 = vmatpush1.msra.mxu0 %v504
  %1164 = vmatprep.subr.mxu0 0.0
  %1165 = vmatpush2.msra.mxu0 0.0
  %1166 = vmatprep.subr.mxu0 0.0
  %1167 = vmatpush2.msra.mxu0 0.0
  %1168 = vmatprep.subr.mxu0 0.0
  %1169 = vmatpush2.msra.mxu0 0.0
  %1170 = vmatprep.subr.mxu0 0.0
  %1171 = vmatpush2.msra.mxu0 0.0
  %1172 = vmatprep.subr.mxu0 0.0
  %1173 = vmatpush2.msra.mxu0 0.0
  %1174 = vmatprep.subr.mxu0 0.0
  %1175 = vmatpush2.msra.mxu0 0.0
  %1176 = vmatprep.subr.mxu0 0.0
  %1177 = vmatpush2.msra.mxu0 0.0
  %1178 = vmatprep.subr.mxu0 0.0
  %1179 = vmatpush2.msra.mxu0 0.0
  %1180 = vmatprep.subr.mxu0 0.0
  %1181 = vmatpush2.msra.mxu0 0.0
  %1182 = vmatprep.subr.mxu0 0.0
  %1183 = vmatpush2.msra.mxu0 0.0
  %1184 = vmatprep.subr.mxu0 0.0
  %1185 = vmatpush2.msra.mxu0 0.0
  %1186 = vmatprep.subr.mxu0 0.0
  %1187 = vmatpush2.msra.mxu0 0.0
  %1188 = vmatprep.subr.mxu0 0.0
  %1189 = vmatpush2.msra.mxu0 0.0
  %1190 = vmatprep.subr.mxu0 0.0
  %1191 = vmatpush2.msra.mxu0 0.0
  %1192 = vmatprep.subr.mxu0 0.0
  %1193 = vmatpush2.msra.mxu0 0.0
  %1194 = vmatprep.subr.mxu0 0.0
  %1195 = vmatpush2.msra.mxu0 0.0
  %1196 = vmatprep.mubr.f32.mxu0 0.0
  %1197 = vmatmul.mubr.f32.gmra.mxu0 %v1130
  %v1198 = vpop.f32.mrf.mxu0
  %v1199 = vadd.f32 0.0, %v1198
  %v1200 = vpop.f32.mrf.mxu0
  %v1201 = vadd.f32 0.0, %v1200
  %1202 = vdwg.mxu0
  %v1203 = vadd.f32 %v818, %v1199
  %v1204 = vadd.f32 %v819, %v1201
  %v1205 = vxor.u32 %v1203, 2147483648
  %v1206 = vmul.f32 %v1205, 1.442695
  %v1207 = vpow.pop %v1206
  %v1208 = vadd.f32 %v1207, 1.0
  %v1209 = vrcp.pop %v1208
  %v1210 = vmul.f32 1.0, %v1209
  %v1211 = vtanh.pop %v1204
  %v1212 = vxor.u32 %v1204, 2147483648
  %v1213 = vmul.f32 %v1212, 1.442695
  %v1214 = vpow.pop %v1213
  %v1215 = vadd.f32 %v1214, 1.0
  %v1216 = vrcp.pop %v1215
  %v1217 = vmul.f32 1.0, %v1216
  %v1218 = vmul.f32 %v1210, %v1124
  %v1219 = vmul.f32 %v1210, %v1211
  %1221 = vrot.lane.b32.xlu0 %v1219, 64
  %v1222 = vpop.permute.xlu0 %1221
  %v1224 = vadd.f32 %v1218, %v1222
  %v1225 = vtanh.pop %v1224
  %v1226 = vmul.f32 %v1217, %v1225
  %1228 = vrot.lane.b32.xlu0 %v1226, 64
  %v1229 = vpop.permute.xlu0 %1228
  %v1230 = vsel %vm828, %v1229, 0
  %1232 = vmatprep.subr.mxu0 0.0
  %1233 = vmatpush1.msra.mxu0 0.0
  %1234 = vmatprep.subr.mxu0 0.0
  %1235 = vmatpush1.msra.mxu0 0.0
  %1236 = vmatprep.subr.mxu0 0.0
  %1237 = vmatpush1.msra.mxu0 0.0
  %1238 = vmatprep.subr.mxu0 0.0
  %1239 = vmatpush1.msra.mxu0 0.0
  %1240 = vmatprep.subr.mxu0 0.0
  %1241 = vmatpush1.msra.mxu0 0.0
  %1242 = vmatprep.subr.mxu0 0.0
  %1243 = vmatpush1.msra.mxu0 0.0
  %1244 = vmatprep.subr.mxu0 0.0
  %1245 = vmatpush1.msra.mxu0 0.0
  %1246 = vmatprep.subr.mxu0 0.0
  %1247 = vmatpush1.msra.mxu0 0.0
  %1248 = vmatprep.subr.mxu0 %v519
  %1249 = vmatpush1.msra.mxu0 %v518
  %1250 = vmatprep.subr.mxu0 %v517
  %1251 = vmatpush1.msra.mxu0 %v516
  %1252 = vmatprep.subr.mxu0 %v515
  %1253 = vmatpush1.msra.mxu0 %v514
  %1254 = vmatprep.subr.mxu0 %v513
  %1255 = vmatpush1.msra.mxu0 %v512
  %1256 = vmatprep.subr.mxu0 %v511
  %1257 = vmatpush1.msra.mxu0 %v510
  %1258 = vmatprep.subr.mxu0 %v509
  %1259 = vmatpush1.msra.mxu0 %v508
  %1260 = vmatprep.subr.mxu0 %v507
  %1261 = vmatpush1.msra.mxu0 %v506
  %1262 = vmatprep.subr.mxu0 %v505
  %1263 = vmatpush1.msra.mxu0 %v504
  %1264 = vmatprep.subr.mxu0 0.0
  %1265 = vmatpush2.msra.mxu0 0.0
  %1266 = vmatprep.subr.mxu0 0.0
  %1267 = vmatpush2.msra.mxu0 0.0
  %1268 = vmatprep.subr.mxu0 0.0
  %1269 = vmatpush2.msra.mxu0 0.0
  %1270 = vmatprep.subr.mxu0 0.0
  %1271 = vmatpush2.msra.mxu0 0.0
  %1272 = vmatprep.subr.mxu0 0.0
  %1273 = vmatpush2.msra.mxu0 0.0
  %1274 = vmatprep.subr.mxu0 0.0
  %1275 = vmatpush2.msra.mxu0 0.0
  %1276 = vmatprep.subr.mxu0 0.0
  %1277 = vmatpush2.msra.mxu0 0.0
  %1278 = vmatprep.subr.mxu0 0.0
  %1279 = vmatpush2.msra.mxu0 0.0
  %1280 = vmatprep.subr.mxu0 0.0
  %1281 = vmatpush2.msra.mxu0 0.0
  %1282 = vmatprep.subr.mxu0 0.0
  %1283 = vmatpush2.msra.mxu0 0.0
  %1284 = vmatprep.subr.mxu0 0.0
  %1285 = vmatpush2.msra.mxu0 0.0
  %1286 = vmatprep.subr.mxu0 0.0
  %1287 = vmatpush2.msra.mxu0 0.0
  %1288 = vmatprep.subr.mxu0 0.0
  %1289 = vmatpush2.msra.mxu0 0.0
  %1290 = vmatprep.subr.mxu0 0.0
  %1291 = vmatpush2.msra.mxu0 0.0
  %1292 = vmatprep.subr.mxu0 0.0
  %1293 = vmatpush2.msra.mxu0 0.0
  %1294 = vmatprep.subr.mxu0 0.0
  %1295 = vmatpush2.msra.mxu0 0.0
  %1296 = vmatprep.mubr.f32.mxu0 0.0
  %1297 = vmatmul.mubr.f32.gmra.mxu0 %v1230
  %v1298 = vpop.f32.mrf.mxu0
  %v1299 = vadd.f32 0.0, %v1298
  %v1300 = vpop.f32.mrf.mxu0
  %v1301 = vadd.f32 0.0, %v1300
  %1302 = vdwg.mxu0
  %v1303 = vadd.f32 %v820, %v1299
  %v1304 = vadd.f32 %v821, %v1301
  %v1305 = vxor.u32 %v1303, 2147483648
  %v1306 = vmul.f32 %v1305, 1.442695
  %v1307 = vpow.pop %v1306
  %v1308 = vadd.f32 %v1307, 1.0
  %v1309 = vrcp.pop %v1308
  %v1310 = vmul.f32 1.0, %v1309
  %v1311 = vtanh.pop %v1304
  %v1312 = vxor.u32 %v1304, 2147483648
  %v1313 = vmul.f32 %v1312, 1.442695
  %v1314 = vpow.pop %v1313
  %v1315 = vadd.f32 %v1314, 1.0
  %v1316 = vrcp.pop %v1315
  %v1317 = vmul.f32 1.0, %v1316
  %v1318 = vmul.f32 %v1310, %v1224
  %v1319 = vmul.f32 %v1310, %v1311
  %1321 = vrot.lane.b32.xlu0 %v1319, 64
  %v1322 = vpop.permute.xlu0 %1321
  %v1324 = vadd.f32 %v1318, %v1322
  %v1325 = vtanh.pop %v1324
  %v1326 = vmul.f32 %v1317, %v1325
  %1328 = vrot.lane.b32.xlu0 %v1326, 64
  %v1329 = vpop.permute.xlu0 %1328
  %v1330 = vsel %vm828, %v1329, 0
  %1332 = vmatprep.subr.mxu0 0.0
  %1333 = vmatpush1.msra.mxu0 0.0
  %1334 = vmatprep.subr.mxu0 0.0
  %1335 = vmatpush1.msra.mxu0 0.0
  %1336 = vmatprep.subr.mxu0 0.0
  %1337 = vmatpush1.msra.mxu0 0.0
  %1338 = vmatprep.subr.mxu0 0.0
  %1339 = vmatpush1.msra.mxu0 0.0
  %1340 = vmatprep.subr.mxu0 0.0
  %1341 = vmatpush1.msra.mxu0 0.0
  %1342 = vmatprep.subr.mxu0 0.0
  %1343 = vmatpush1.msra.mxu0 0.0
  %1344 = vmatprep.subr.mxu0 0.0
  %1345 = vmatpush1.msra.mxu0 0.0
  %1346 = vmatprep.subr.mxu0 0.0
  %1347 = vmatpush1.msra.mxu0 0.0
  %1348 = vmatprep.subr.mxu0 %v519
  %1349 = vmatpush1.msra.mxu0 %v518
  %1350 = vmatprep.subr.mxu0 %v517
  %1351 = vmatpush1.msra.mxu0 %v516
  %1352 = vmatprep.subr.mxu0 %v515
  %1353 = vmatpush1.msra.mxu0 %v514
  %1354 = vmatprep.subr.mxu0 %v513
  %1355 = vmatpush1.msra.mxu0 %v512
  %1356 = vmatprep.subr.mxu0 %v511
  %1357 = vmatpush1.msra.mxu0 %v510
  %1358 = vmatprep.subr.mxu0 %v509
  %1359 = vmatpush1.msra.mxu0 %v508
  %1360 = vmatprep.subr.mxu0 %v507
  %1361 = vmatpush1.msra.mxu0 %v506
  %1362 = vmatprep.subr.mxu0 %v505
  %1363 = vmatpush1.msra.mxu0 %v504
  %1364 = vmatprep.subr.mxu0 0.0
  %1365 = vmatpush2.msra.mxu0 0.0
  %1366 = vmatprep.subr.mxu0 0.0
  %1367 = vmatpush2.msra.mxu0 0.0
  %1368 = vmatprep.subr.mxu0 0.0
  %1369 = vmatpush2.msra.mxu0 0.0
  %1370 = vmatprep.subr.mxu0 0.0
  %1371 = vmatpush2.msra.mxu0 0.0
  %1372 = vmatprep.subr.mxu0 0.0
  %1373 = vmatpush2.msra.mxu0 0.0
  %1374 = vmatprep.subr.mxu0 0.0
  %1375 = vmatpush2.msra.mxu0 0.0
  %1376 = vmatprep.subr.mxu0 0.0
  %1377 = vmatpush2.msra.mxu0 0.0
  %1378 = vmatprep.subr.mxu0 0.0
  %1379 = vmatpush2.msra.mxu0 0.0
  %1380 = vmatprep.subr.mxu0 0.0
  %1381 = vmatpush2.msra.mxu0 0.0
  %1382 = vmatprep.subr.mxu0 0.0
  %1383 = vmatpush2.msra.mxu0 0.0
  %1384 = vmatprep.subr.mxu0 0.0
  %1385 = vmatpush2.msra.mxu0 0.0
  %1386 = vmatprep.subr.mxu0 0.0
  %1387 = vmatpush2.msra.mxu0 0.0
  %1388 = vmatprep.subr.mxu0 0.0
  %1389 = vmatpush2.msra.mxu0 0.0
  %1390 = vmatprep.subr.mxu0 0.0
  %1391 = vmatpush2.msra.mxu0 0.0
  %1392 = vmatprep.subr.mxu0 0.0
  %1393 = vmatpush2.msra.mxu0 0.0
  %1394 = vmatprep.subr.mxu0 0.0
  %1395 = vmatpush2.msra.mxu0 0.0
  %1396 = vmatprep.mubr.f32.mxu0 0.0
  %1397 = vmatmul.mubr.f32.gmra.mxu0 %v1330
  %v1398 = vpop.f32.mrf.mxu0
  %v1399 = vadd.f32 0.0, %v1398
  %v1400 = vpop.f32.mrf.mxu0
  %v1401 = vadd.f32 0.0, %v1400
  %1402 = vdwg.mxu0
  %v1403 = vadd.f32 %v822, %v1399
  %v1404 = vadd.f32 %v823, %v1401
  %v1405 = vxor.u32 %v1403, 2147483648
  %v1406 = vmul.f32 %v1405, 1.442695
  %v1407 = vpow.pop %v1406
  %v1408 = vadd.f32 %v1407, 1.0
  %v1409 = vrcp.pop %v1408
  %v1410 = vmul.f32 1.0, %v1409
  %v1411 = vtanh.pop %v1404
  %v1412 = vxor.u32 %v1404, 2147483648
  %v1413 = vmul.f32 %v1412, 1.442695
  %v1414 = vpow.pop %v1413
  %v1415 = vadd.f32 %v1414, 1.0
  %v1416 = vrcp.pop %v1415
  %v1417 = vmul.f32 1.0, %v1416
  %v1418 = vmul.f32 %v1410, %v1324
  %v1419 = vmul.f32 %v1410, %v1411
  %1421 = vrot.lane.b32.xlu0 %v1419, 64
  %v1422 = vpop.permute.xlu0 %1421
  %v1424 = vadd.f32 %v1418, %v1422
  %v1425 = vtanh.pop %v1424
  %v1426 = vmul.f32 %v1417, %v1425
  %1428 = vrot.lane.b32.xlu0 %v1426, 64
  %v1429 = vpop.permute.xlu0 %1428
  %v1430 = vsel %vm828, %v1429, 0
  %1432 = vmatprep.subr.mxu0 0.0
  %1433 = vmatpush1.msra.mxu0 0.0
  %1434 = vmatprep.subr.mxu0 0.0
  %1435 = vmatpush1.msra.mxu0 0.0
  %1436 = vmatprep.subr.mxu0 0.0
  %1437 = vmatpush1.msra.mxu0 0.0
  %1438 = vmatprep.subr.mxu0 0.0
  %1439 = vmatpush1.msra.mxu0 0.0
  %1440 = vmatprep.subr.mxu0 0.0
  %1441 = vmatpush1.msra.mxu0 0.0
  %1442 = vmatprep.subr.mxu0 0.0
  %1443 = vmatpush1.msra.mxu0 0.0
  %1444 = vmatprep.subr.mxu0 0.0
  %1445 = vmatpush1.msra.mxu0 0.0
  %1446 = vmatprep.subr.mxu0 0.0
  %1447 = vmatpush1.msra.mxu0 0.0
  %1448 = vmatprep.subr.mxu0 %v519
  %1449 = vmatpush1.msra.mxu0 %v518
  %1450 = vmatprep.subr.mxu0 %v517
  %1451 = vmatpush1.msra.mxu0 %v516
  %1452 = vmatprep.subr.mxu0 %v515
  %1453 = vmatpush1.msra.mxu0 %v514
  %1454 = vmatprep.subr.mxu0 %v513
  %1455 = vmatpush1.msra.mxu0 %v512
  %1456 = vmatprep.subr.mxu0 %v511
  %1457 = vmatpush1.msra.mxu0 %v510
  %1458 = vmatprep.subr.mxu0 %v509
  %1459 = vmatpush1.msra.mxu0 %v508
  %1460 = vmatprep.subr.mxu0 %v507
  %1461 = vmatpush1.msra.mxu0 %v506
  %1462 = vmatprep.subr.mxu0 %v505
  %1463 = vmatpush1.msra.mxu0 %v504
  %1464 = vmatprep.subr.mxu0 0.0
  %1465 = vmatpush2.msra.mxu0 0.0
  %1466 = vmatprep.subr.mxu0 0.0
  %1467 = vmatpush2.msra.mxu0 0.0
  %1468 = vmatprep.subr.mxu0 0.0
  %1469 = vmatpush2.msra.mxu0 0.0
  %1470 = vmatprep.subr.mxu0 0.0
  %1471 = vmatpush2.msra.mxu0 0.0
  %1472 = vmatprep.subr.mxu0 0.0
  %1473 = vmatpush2.msra.mxu0 0.0
  %1474 = vmatprep.subr.mxu0 0.0
  %1475 = vmatpush2.msra.mxu0 0.0
  %1476 = vmatprep.subr.mxu0 0.0
  %1477 = vmatpush2.msra.mxu0 0.0
  %1478 = vmatprep.subr.mxu0 0.0
  %1479 = vmatpush2.msra.mxu0 0.0
  %1480 = vmatprep.subr.mxu0 0.0
  %1481 = vmatpush2.msra.mxu0 0.0
  %1482 = vmatprep.subr.mxu0 0.0
  %1483 = vmatpush2.msra.mxu0 0.0
  %1484 = vmatprep.subr.mxu0 0.0
  %1485 = vmatpush2.msra.mxu0 0.0
  %1486 = vmatprep.subr.mxu0 0.0
  %1487 = vmatpush2.msra.mxu0 0.0
  %1488 = vmatprep.subr.mxu0 0.0
  %1489 = vmatpush2.msra.mxu0 0.0
  %1490 = vmatprep.subr.mxu0 0.0
  %1491 = vmatpush2.msra.mxu0 0.0
  %1492 = vmatprep.subr.mxu0 0.0
  %1493 = vmatpush2.msra.mxu0 0.0
  %1494 = vmatprep.subr.mxu0 0.0
  %1495 = vmatpush2.msra.mxu0 0.0
  %1496 = vmatprep.mubr.f32.mxu0 0.0
  %1497 = vmatmul.mubr.f32.gmra.mxu0 %v1430
  %v1498 = vpop.f32.mrf.mxu0
  %v1499 = vadd.f32 0.0, %v1498
  %v1500 = vpop.f32.mrf.mxu0
  %v1501 = vadd.f32 0.0, %v1500
  %1502 = vdwg.mxu0
  %v1503 = vadd.f32 %v824, %v1499
  %v1504 = vadd.f32 %v825, %v1501
  %v1505 = vxor.u32 %v1503, 2147483648
  %v1506 = vmul.f32 %v1505, 1.442695
  %v1507 = vpow.pop %v1506
  %v1508 = vadd.f32 %v1507, 1.0
  %v1509 = vrcp.pop %v1508
  %v1510 = vmul.f32 1.0, %v1509
  %v1511 = vtanh.pop %v1504
  %v1512 = vxor.u32 %v1504, 2147483648
  %v1513 = vmul.f32 %v1512, 1.442695
  %v1514 = vpow.pop %v1513
  %v1515 = vadd.f32 %v1514, 1.0
  %v1516 = vrcp.pop %v1515
  %v1517 = vmul.f32 1.0, %v1516
  %v1518 = vmul.f32 %v1510, %v1424
  %v1519 = vmul.f32 %v1510, %v1511
  %1521 = vrot.lane.b32.xlu0 %v1519, 64
  %v1522 = vpop.permute.xlu0 %1521
  %v1524 = vadd.f32 %v1518, %v1522
  %v1525 = vtanh.pop %v1524
  %v1526 = vmul.f32 %v1517, %v1525
  %1528 = vrot.lane.b32.xlu0 %v1526, 64
  %v1529 = vpop.permute.xlu0 %1528
  %v1530 = vsel %vm828, %v1529, 0
  %1532 = vmatprep.subr.mxu0 0.0
  %1533 = vmatpush1.msra.mxu0 0.0
  %1534 = vmatprep.subr.mxu0 0.0
  %1535 = vmatpush1.msra.mxu0 0.0
  %1536 = vmatprep.subr.mxu0 0.0
  %1537 = vmatpush1.msra.mxu0 0.0
  %1538 = vmatprep.subr.mxu0 0.0
  %1539 = vmatpush1.msra.mxu0 0.0
  %1540 = vmatprep.subr.mxu0 0.0
  %1541 = vmatpush1.msra.mxu0 0.0
  %1542 = vmatprep.subr.mxu0 0.0
  %1543 = vmatpush1.msra.mxu0 0.0
  %1544 = vmatprep.subr.mxu0 0.0
  %1545 = vmatpush1.msra.mxu0 0.0
  %1546 = vmatprep.subr.mxu0 0.0
  %1547 = vmatpush1.msra.mxu0 0.0
  %1548 = vmatprep.subr.mxu0 %v519
  %1549 = vmatpush1.msra.mxu0 %v518
  %1550 = vmatprep.subr.mxu0 %v517
  %1551 = vmatpush1.msra.mxu0 %v516
  %1552 = vmatprep.subr.mxu0 %v515
  %1553 = vmatpush1.msra.mxu0 %v514
  %1554 = vmatprep.subr.mxu0 %v513
  %1555 = vmatpush1.msra.mxu0 %v512
  %1556 = vmatprep.subr.mxu0 %v511
  %1557 = vmatpush1.msra.mxu0 %v510
  %1558 = vmatprep.subr.mxu0 %v509
  %1559 = vmatpush1.msra.mxu0 %v508
  %1560 = vmatprep.subr.mxu0 %v507
  %1561 = vmatpush1.msra.mxu0 %v506
  %1562 = vmatprep.subr.mxu0 %v505
  %1563 = vmatpush1.msra.mxu0 %v504
  %1564 = vmatprep.subr.mxu0 0.0
  %1565 = vmatpush2.msra.mxu0 0.0
  %1566 = vmatprep.subr.mxu0 0.0
  %1567 = vmatpush2.msra.mxu0 0.0
  %1568 = vmatprep.subr.mxu0 0.0
  %1569 = vmatpush2.msra.mxu0 0.0
  %1570 = vmatprep.subr.mxu0 0.0
  %1571 = vmatpush2.msra.mxu0 0.0
  %1572 = vmatprep.subr.mxu0 0.0
  %1573 = vmatpush2.msra.mxu0 0.0
  %1574 = vmatprep.subr.mxu0 0.0
  %1575 = vmatpush2.msra.mxu0 0.0
  %1576 = vmatprep.subr.mxu0 0.0
  %1577 = vmatpush2.msra.mxu0 0.0
  %1578 = vmatprep.subr.mxu0 0.0
  %1579 = vmatpush2.msra.mxu0 0.0
  %1580 = vmatprep.subr.mxu0 0.0
  %1581 = vmatpush2.msra.mxu0 0.0
  %1582 = vmatprep.subr.mxu0 0.0
  %1583 = vmatpush2.msra.mxu0 0.0
  %1584 = vmatprep.subr.mxu0 0.0
  %1585 = vmatpush2.msra.mxu0 0.0
  %1586 = vmatprep.subr.mxu0 0.0
  %1587 = vmatpush2.msra.mxu0 0.0
  %1588 = vmatprep.subr.mxu0 0.0
  %1589 = vmatpush2.msra.mxu0 0.0
  %1590 = vmatprep.subr.mxu0 0.0
  %1591 = vmatpush2.msra.mxu0 0.0
  %1592 = vmatprep.subr.mxu0 0.0
  %1593 = vmatpush2.msra.mxu0 0.0
  %1594 = vmatprep.subr.mxu0 0.0
  %1595 = vmatpush2.msra.mxu0 0.0
  %1596 = vmatprep.mubr.f32.mxu0 0.0
  %1597 = vmatmul.mubr.f32.gmra.mxu0 %v1530
  %v1598 = vpop.f32.mrf.mxu0
  %v1599 = vadd.f32 0.0, %v1598
  %v1600 = vpop.f32.mrf.mxu0
  %v1601 = vadd.f32 0.0, %v1600
  %1602 = vdwg.mxu0
  %v1603 = vadd.f32 %v826, %v1599
  %v1604 = vadd.f32 %v827, %v1601
  %v1605 = vxor.u32 %v1603, 2147483648
  %v1606 = vmul.f32 %v1605, 1.442695
  %v1607 = vpow.pop %v1606
  %v1608 = vadd.f32 %v1607, 1.0
  %v1609 = vrcp.pop %v1608
  %v1610 = vmul.f32 1.0, %v1609
  %v1611 = vtanh.pop %v1604
  %v1612 = vxor.u32 %v1604, 2147483648
  %v1613 = vmul.f32 %v1612, 1.442695
  %v1614 = vpow.pop %v1613
  %v1615 = vadd.f32 %v1614, 1.0
  %v1616 = vrcp.pop %v1615
  %v1617 = vmul.f32 1.0, %v1616
  %v1618 = vmul.f32 %v1610, %v1524
  %v1619 = vmul.f32 %v1610, %v1611
  %1621 = vrot.lane.b32.xlu0 %v1619, 64
  %v1622 = vpop.permute.xlu0 %1621
  %v1624 = vadd.f32 %v1618, %v1622
  %v1625 = vtanh.pop %v1624
  %v1626 = vmul.f32 %v1617, %v1625
  %v1627 = vld [vmem:[%s4] sm:$0xff]
  %v1628 = vld [vmem:[%s4 + $0x8] sm:$0xff]
  %v1629 = vld [vmem:[%s4 + $0x10] sm:$0xff]
  %v1630 = vld [vmem:[%s4 + $0x18] sm:$0xff]
  %v1631 = vld [vmem:[%s4 + $0x20] sm:$0xff]
  %v1632 = vld [vmem:[%s4 + $0x28] sm:$0xff]
  %v1633 = vld [vmem:[%s4 + $0x30] sm:$0xff]
  %v1634 = vld [vmem:[%s4 + $0x38] sm:$0xff]
  %v1635 = vld [vmem:[%s5] sm:$0x1]
  %v1637 = vlaneseq
  %v1638 = vshrl.u32 %v1637, 7
  %v1639 = vsub.s32 0, %v1638
  %v1640 = vrot.slane %v1635, %v1639
  %1643 = vrot.lane.b32.xlu0 %v1626, 64
  %v1644 = vpop.permute.xlu0 %1643
  %v1645 = vsel %vm828, %v1644, 0
  %1647 = vmatprep.subr.mxu0 0.0
  %1648 = vmatpush1.msra.mxu0 0.0
  %1649 = vmatprep.subr.mxu0 0.0
  %1650 = vmatpush1.msra.mxu0 0.0
  %1651 = vmatprep.subr.mxu0 0.0
  %1652 = vmatpush1.msra.mxu0 0.0
  %1653 = vmatprep.subr.mxu0 0.0
  %1654 = vmatpush1.msra.mxu0 0.0
  %1655 = vmatprep.subr.mxu0 0.0
  %1656 = vmatpush1.msra.mxu0 0.0
  %1657 = vmatprep.subr.mxu0 0.0
  %1658 = vmatpush1.msra.mxu0 0.0
  %1659 = vmatprep.subr.mxu0 0.0
  %1660 = vmatpush1.msra.mxu0 0.0
  %1661 = vmatprep.subr.mxu0 0.0
  %1662 = vmatpush1.msra.mxu0 0.0
  %1663 = vmatprep.subr.mxu0 0.0
  %1664 = vmatpush1.msra.mxu0 %v1634
  %1665 = vmatprep.subr.mxu0 0.0
  %1666 = vmatpush1.msra.mxu0 %v1633
  %1667 = vmatprep.subr.mxu0 0.0
  %1668 = vmatpush1.msra.mxu0 %v1632
  %1669 = vmatprep.subr.mxu0 0.0
  %1670 = vmatpush1.msra.mxu0 %v1631
  %1671 = vmatprep.subr.mxu0 0.0
  %1672 = vmatpush1.msra.mxu0 %v1630
  %1673 = vmatprep.subr.mxu0 0.0
  %1674 = vmatpush1.msra.mxu0 %v1629
  %1675 = vmatprep.subr.mxu0 0.0
  %1676 = vmatpush1.msra.mxu0 %v1628
  %1677 = vmatprep.subr.mxu0 0.0
  %1678 = vmatpush1.msra.mxu0 %v1627
  %1679 = vmatprep.subr.mxu0 0.0
  %1680 = vmatpush2.msra.mxu0 0.0
  %1681 = vmatprep.subr.mxu0 0.0
  %1682 = vmatpush2.msra.mxu0 0.0
  %1683 = vmatprep.subr.mxu0 0.0
  %1684 = vmatpush2.msra.mxu0 0.0
  %1685 = vmatprep.subr.mxu0 0.0
  %1686 = vmatpush2.msra.mxu0 0.0
  %1687 = vmatprep.subr.mxu0 0.0
  %1688 = vmatpush2.msra.mxu0 0.0
  %1689 = vmatprep.subr.mxu0 0.0
  %1690 = vmatpush2.msra.mxu0 0.0
  %1691 = vmatprep.subr.mxu0 0.0
  %1692 = vmatpush2.msra.mxu0 0.0
  %1693 = vmatprep.subr.mxu0 0.0
  %1694 = vmatpush2.msra.mxu0 0.0
  %1695 = vmatprep.subr.mxu0 0.0
  %1696 = vmatpush2.msra.mxu0 0.0
  %1697 = vmatprep.subr.mxu0 0.0
  %1698 = vmatpush2.msra.mxu0 0.0
  %1699 = vmatprep.subr.mxu0 0.0
  %1700 = vmatpush2.msra.mxu0 0.0
  %1701 = vmatprep.subr.mxu0 0.0
  %1702 = vmatpush2.msra.mxu0 0.0
  %1703 = vmatprep.subr.mxu0 0.0
  %1704 = vmatpush2.msra.mxu0 0.0
  %1705 = vmatprep.subr.mxu0 0.0
  %1706 = vmatpush2.msra.mxu0 0.0
  %1707 = vmatprep.subr.mxu0 0.0
  %1708 = vmatpush2.msra.mxu0 0.0
  %1709 = vmatprep.subr.mxu0 0.0
  %1710 = vmatpush2.msra.mxu0 0.0
  %1711 = vmatprep.mubr.f32.mxu0 0.0
  %1712 = vmatmul.mubr.f32.gmra.mxu0 %v1645
  %v1713 = vpop.f32.mrf.mxu0
  %v1714 = vadd.f32 %v1640, %v1713
  %v1715 = vpop.f32.mrf.mxu0
  %1716 = vdwg.mxu0
  %1717 = vst [vmem:[%s6] sm:$0xff] %v1714
  // Predicated region
  $region26: #{prior_network_forward.1} parent=0 // pred_check
    _
  $region27: #{prior_network_forward.1} parent=0 // pred_check_branch
    %1719 = sbr.rel (0) target = $region29
  $region28: #{prior_network_forward.1} parent=0 // pred_region
    _
  $region29: #{prior_network_forward.1} parent=0 // pred_fallthru
    _
  // Predicated region
  $region30: #{prior_network_forward.1} parent=0 // pred_check
    _
  $region31: #{prior_network_forward.1} parent=0 // pred_check_branch
    %1721 = sbr.rel (0) target = $region33
  $region32: #{prior_network_forward.1} parent=0 // pred_region
    _
  $region33: #{prior_network_forward.1} parent=0 // pred_fallthru
    _

</llo_original>
